<compile_context>
chip_gen: v7x
topology: tpu7x:2x2x1
jax: 0.10.0
libtpu: 0.0.40
codegen_flags: <defaults>
</compile_context>

<pallas_src>
import jax
import jax.numpy as jnp
from jax import lax
from jax.experimental import pallas as pl
from jax.experimental.pallas import tpu as pltpu


LANE = 128
SUBLANE = 8


def _round_up(x, m):
    return ((x + m - 1) // m) * m


def _pick_chunk(n, cap):
    """Largest divisor of n that is <= cap (always >= 1, never full-extent
    fallback beyond cap)."""
    cap = max(1, min(n, cap))
    for c in range(cap, 0, -1):
        if n % c == 0:
            return c
    return 1


def _pick_batch_chunk(bp, cap=256):
    """Multiple-of-8 divisor of bp (bp itself is a multiple of 8).

    Prefers two shards (one per v7x TensorCore) when possible and bounds the
    shard size so per-chunk VMEM stays small for large batches."""
    best = bp // 2 if (bp % 16 == 0 and bp // 2 >= SUBLANE) else bp
    if best > cap:
        for c in range(cap - cap % SUBLANE, SUBLANE - 1, -SUBLANE):
            if bp % c == 0:
                return c
    return best


def _vmem_limit_bytes():
    # Generation-aware scoped-VMEM budget (v7x only has 64 MiB physical).
    try:
        cap = int(pltpu.get_tpu_info().vmem_capacity_bytes)
    except Exception:  # conservative fallback if query unavailable
        cap = 64 * 1024 * 1024
    return max(16 * 1024 * 1024, cap // 2)


# ---------------------------------------------------------------------------
# Fused kernel: per-chunk input projection (bf16 MXU) + GRU recurrence + FC
# ---------------------------------------------------------------------------
def gru_fused_kernel(x_ref, wih_ref, bg_ref, whh_ref, bhn_ref, wfc_ref,
                     bfc_ref, out_ref, h_ref, gi_ref):
    # x_ref  : [t_chunk*b_chunk, E]   bf16 embedded tokens (time-major rows)
    # wih_ref: [E, 3*Hp]              bf16 input weights, gate panels padded
    # bg_ref : [1, 3*Hp]              f32 folded biases  b_ih + b_hh[r, z]
    # whh_ref: [Hp, 3*Hp]             f32 recurrent weights
    # bhn_ref: [1, Hp]                f32 n-gate recurrent bias
    # wfc_ref: [Hp, Op], bfc_ref: [1, Op]   f32 classifier
    # out_ref: [b_chunk, Op]          lane-dense padded logits (f32)
    # h_ref  : [b_chunk, Hp]          persistent hidden-state scratch (f32)
    # gi_ref : [t_chunk*b_chunk, 3*Hp]  per-chunk input projection scratch
    t = pl.program_id(1)
    b_chunk, Hp = h_ref.shape
    t_chunk = gi_ref.shape[0] // b_chunk

    @pl.when(t == 0)
    def _init():
        h_ref[...] = jnp.zeros_like(h_ref)

    # Fused input projection for the whole chunk: one bf16 MXU matmul with
    # f32 accumulation; result parked in VMEM scratch (not in vregs).  This
    # replaces the old separate kernel + f32 [T, B, 3*Hp] HBM round trip.
    gi_ref[...] = (
        jnp.dot(x_ref[...], wih_ref[...], preferred_element_type=jnp.float32)
        + bg_ref[...]
    )

    # Hoisted broadcast (JAX does not CSE broadcast_in_dim inside the loop).
    bhn = jnp.broadcast_to(bhn_ref[...], (b_chunk, Hp))

    h = h_ref[...]
    # Fully unrolled serial recurrence over the (static, small) chunk.  W_hh
    # is read from its VMEM ref per step (streamed) rather than hoisted into
    # a ~48-vreg live value, avoiding spills on the serial critical path.
    # All gate math stays f32.
    # TODO(synk): v5e latency option: hold W_hh in MXU weight registers via
    # pltpu.matmul_push_rhs / matmul_acc_lhs instead of re-staging per step.
    for tt in range(t_chunk):
        gi = gi_ref[tt * b_chunk:(tt + 1) * b_chunk, :]        # 8-aligned rows
        gh = jnp.dot(h, whh_ref[...], preferred_element_type=jnp.float32)
        r = jax.nn.sigmoid(gi[:, 0:Hp] + gh[:, 0:Hp])
        z = jax.nn.sigmoid(gi[:, Hp:2 * Hp] + gh[:, Hp:2 * Hp])
        n = jnp.tanh(gi[:, 2 * Hp:3 * Hp] + r * (gh[:, 2 * Hp:3 * Hp] + bhn))
        h = (1.0 - z) * n + z * h
    h_ref[...] = h

    @pl.when(t == pl.num_programs(1) - 1)
    def _finalize():
        out_ref[...] = (
            jnp.dot(h, wfc_ref[...], preferred_element_type=jnp.float32)
            + bfc_ref[...]
        )


# ---------------------------------------------------------------------------
# Parameter preparation: pad gate panels to 128 lanes, fold biases, bf16 W_ih
# ---------------------------------------------------------------------------
def prepare_kernel_params(params):
    w_ih, w_hh = params["w_ih"], params["w_hh"]     # [E,3H], [H,3H]
    b_ih, b_hh = params["b_ih"], params["b_hh"]     # [1,3H]
    w_fc, b_fc = params["w_fc"], params["b_fc"]     # [H,O], [1,O]

    E = w_ih.shape[0]
    H = w_hh.shape[0]
    O = w_fc.shape[1]
    Hp = _round_up(H, LANE)
    Op = _round_up(O, LANE)

    def pad_gates(w, rows_out):
        # [rows_in, 3H] -> [rows_out, 3*Hp] with each gate panel lane-aligned.
        out = jnp.zeros((rows_out, 3 * Hp), jnp.float32)
        for g in range(3):
            out = out.at[: w.shape[0], g * Hp: g * Hp + H].set(
                w[:, g * H: (g + 1) * H])
        return out

    # Fold b_ih (all gates) + b_hh (r,z gates only) into the input projection.
    b_comb = b_ih + jnp.concatenate(
        [b_hh[:, : 2 * H], jnp.zeros((1, H), jnp.float32)], axis=1)

    kp = {
        "w_ih": pad_gates(w_ih, E).astype(jnp.bfloat16),   # bf16 MXU operand
        "w_hh": pad_gates(w_hh, Hp),                       # f32 (recurrence)
        "b_g": pad_gates(b_comb, 1),
        "b_hn": jnp.zeros((1, Hp), jnp.float32).at[:, :H].set(b_hh[:, 2 * H:]),
        "w_fc": jnp.zeros((Hp, Op), jnp.float32).at[:H, :O].set(w_fc),
        "b_fc": jnp.zeros((1, Op), jnp.float32).at[:, :O].set(b_fc),
    }
    return kp, H, O, Hp, Op


# ---------------------------------------------------------------------------
# Forward pass
# ---------------------------------------------------------------------------
def rnn_forward(x_ids, params, *, t_chunk=None):
    """x_ids: [B, T] int32 token ids. Returns logits [B, output_dim]."""
    kp, H, O, Hp, Op = prepare_kernel_params(params)
    emb_table = params["embedding"]                 # [V, E]
    B, T = x_ids.shape
    E = emb_table.shape[1]

    # Pad batch to a sublane multiple so every block / per-step slice is
    # 8-aligned (the hardware padded those sublanes anyway); padded rows are
    # dropped at the end.
    Bp = _round_up(max(B, SUBLANE), SUBLANE)
    if Bp != B:
        x_ids = jnp.pad(x_ids, ((0, Bp - B), (0, 0)))   # any valid id works
    b_chunk = _pick_batch_chunk(Bp)
    nb = Bp // b_chunk                                   # 2 shards on v7x

    if t_chunk is None:
        t_chunk = _pick_chunk(T, cap=min(64, max(1, 1024 // b_chunk)))
    assert T % t_chunk == 0, "t_chunk must divide T"
    nt = T // t_chunk

    # Embedding gather in bf16 (halves gather traffic; also the bf16 matmul
    # operand), emitted directly in [batch-shard, time, batch-in-shard]
    # order so the kernel's [t_chunk*b_chunk, E] blocks are contiguous rows
    # and no HBM transpose / in-kernel reshape is needed.
    # TODO(synk): fuse the gather into the kernel (PrefetchScalarGridSpec +
    # per-row DMA) to remove this HBM intermediate entirely.
    ids_tm = x_ids.reshape(nb, b_chunk, T).transpose(0, 2, 1)   # [nb, T, bc]
    emb_bf16 = emb_table.astype(jnp.bfloat16)
    x_in = jnp.take(emb_bf16, ids_tm, axis=0).reshape(nb, T * b_chunk, E)

    rows = t_chunk * b_chunk
    out_padded = pl.pallas_call(
        gru_fused_kernel,
        out_shape=jax.ShapeDtypeStruct((Bp, Op), jnp.float32),
        grid=(nb, nt),
        in_specs=[
            pl.BlockSpec((None, rows, E), lambda b, t: (b, t, 0)),
            pl.BlockSpec((E, 3 * Hp), lambda b, t: (0, 0)),
            pl.BlockSpec((1, 3 * Hp), lambda b, t: (0, 0)),
            pl.BlockSpec((Hp, 3 * Hp), lambda b, t: (0, 0)),
            pl.BlockSpec((1, Hp), lambda b, t: (0, 0)),
            pl.BlockSpec((Hp, Op), lambda b, t: (0, 0)),
            pl.BlockSpec((1, Op), lambda b, t: (0, 0)),
        ],
        out_specs=pl.BlockSpec((b_chunk, Op), lambda b, t: (b, 0)),
        scratch_shapes=[
            pltpu.VMEM((b_chunk, Hp), jnp.float32),      # hidden state
            pltpu.VMEM((rows, 3 * Hp), jnp.float32),     # chunk projection
        ],
        compiler_params=pltpu.CompilerParams(
            dimension_semantics=("parallel", "arbitrary"),
            vmem_limit_bytes=_vmem_limit_bytes()),
    )(x_in, kp["w_ih"], kp["b_g"], kp["w_hh"], kp["b_hn"],
      kp["w_fc"], kp["b_fc"])

    return out_padded[:B, :O]                       # strip batch/lane padding


# ---------------------------------------------------------------------------
# Parameters & pure-JAX reference
# ---------------------------------------------------------------------------
def init_params(key, vocab_size, embedding_dim=128, hidden_dim=64,
                output_dim=10, padding_idx=0):
    ks = jax.random.split(key, 7)
    s = 1.0 / jnp.sqrt(hidden_dim)

    emb = jax.random.normal(ks[0], (vocab_size, embedding_dim), jnp.float32)
    emb = emb.at[padding_idx].set(0.0)  # nn.Embedding padding_idx row is zero

    def u(k, shape):
        return jax.random.uniform(k, shape, jnp.float32, -s, s)

    return {
        "embedding": emb,
        # stored transposed relative to PyTorch ([3H, in] -> [in, 3H]),
        # PyTorch gate order (r, z, n)
        "w_ih": u(ks[1], (embedding_dim, 3 * hidden_dim)),
        "w_hh": u(ks[2], (hidden_dim, 3 * hidden_dim)),
        "b_ih": u(ks[3], (1, 3 * hidden_dim)),
        "b_hh": u(ks[4], (1, 3 * hidden_dim)),
        "w_fc": u(ks[5], (hidden_dim, output_dim)),
        "b_fc": u(ks[6], (1, output_dim)),
    }


def reference_forward(x_ids, params, proj_dtype=jnp.float32):
    """Pure-JAX reference of the same GRU + FC.

    proj_dtype=bfloat16 rounds the input-projection operands (embedding,
    W_ih) like the kernel does; recurrence / gate math stays f32."""
    hi = lax.Precision.HIGHEST
    emb_t = params["embedding"].astype(proj_dtype).astype(jnp.float32)
    w_ih = params["w_ih"].astype(proj_dtype).astype(jnp.float32)
    emb = jnp.take(emb_t, x_ids, axis=0)                 # [B, T, E]
    B, T, _ = emb.shape
    H = params["w_hh"].shape[0]
    h = jnp.zeros((B, H), jnp.float32)
    for t in range(T):
        gi = jnp.dot(emb[:, t, :], w_ih, precision=hi) + params["b_ih"]
        gh = jnp.dot(h, params["w_hh"], precision=hi) + params["b_hh"]
        r = jax.nn.sigmoid(gi[:, :H] + gh[:, :H])
        z = jax.nn.sigmoid(gi[:, H:2 * H] + gh[:, H:2 * H])
        n = jnp.tanh(gi[:, 2 * H:] + r * gh[:, 2 * H:])
        h = (1.0 - z) * n + z * h
    return jnp.dot(h, params["w_fc"], precision=hi) + params["b_fc"]


if __name__ == "__main__":
    key = jax.random.PRNGKey(0)
    vocab_size = 50
    B, T = 2, 8

    pkey, xkey = jax.random.split(key)
    params = init_params(pkey, vocab_size)
    x_ids = jax.random.randint(xkey, (B, T), 0, vocab_size, dtype=jnp.int32)

    # t_chunk=4 -> a 2-step "arbitrary" time grid, exercising the persistent
    # hidden-state scratch / pl.when init / finalize path.
    out = rnn_forward(x_ids, params, t_chunk=4)
    out = jax.block_until_ready(out)
    assert out.shape == (B, 10)

    # Tight check vs. a reference using the same bf16-rounded projection
    # operands (recurrence / gates are f32 in both paths).
    ref_bf16 = reference_forward(x_ids, params, proj_dtype=jnp.bfloat16)
    assert jnp.allclose(out, ref_bf16, atol=2e-3, rtol=2e-3)

    # Loose check vs. the pure-f32 reference (bounds the bf16 projection
    # error end-to-end).
    ref_f32 = reference_forward(x_ids, params)
    assert jnp.allclose(out, ref_f32, atol=5e-2, rtol=5e-2)

    print("KERNEL_OK")
</pallas_src>

<mosaic_0001>
module attributes {stable_mosaic.version = 11 : i64} {
  func.func @gru_fused_kernel(%arg0: i32, %arg1: i32, %arg2: memref<1x32x128xbf16, #tpu.memory_space<vmem>>, %arg3: memref<128x384xbf16, #tpu.memory_space<vmem>>, %arg4: memref<1x384xf32, #tpu.memory_space<vmem>>, %arg5: memref<128x384xf32, #tpu.memory_space<vmem>>, %arg6: memref<1x128xf32, #tpu.memory_space<vmem>>, %arg7: memref<128x128xf32, #tpu.memory_space<vmem>>, %arg8: memref<1x128xf32, #tpu.memory_space<vmem>>, %arg9: memref<8x128xf32, #tpu.memory_space<vmem>>, %arg10: memref<8x128xf32, #tpu.memory_space<vmem>>, %arg11: memref<32x384xf32, #tpu.memory_space<vmem>>) attributes {dimension_semantics = [#tpu.dimension_semantics<parallel>, #tpu.dimension_semantics<arbitrary>], iteration_bounds = array<i64: 1, 2>, scalar_prefetch = 0 : i64, scratch_operands = 2 : i64, tpu.core_type = #tpu.core_type<tc>, window_params = [{transform_indices = @transform_0, window_bounds = array<i64: 1, 32, 128>}, {pipeline_mode = #tpu.pipeline_mode<synchronous>, transform_indices = @transform_1, window_bounds = array<i64: 128, 384>}, {pipeline_mode = #tpu.pipeline_mode<synchronous>, transform_indices = @transform_2, window_bounds = array<i64: 1, 384>}, {pipeline_mode = #tpu.pipeline_mode<synchronous>, transform_indices = @transform_3, window_bounds = array<i64: 128, 384>}, {pipeline_mode = #tpu.pipeline_mode<synchronous>, transform_indices = @transform_4, window_bounds = array<i64: 1, 128>}, {pipeline_mode = #tpu.pipeline_mode<synchronous>, transform_indices = @transform_5, window_bounds = array<i64: 128, 128>}, {pipeline_mode = #tpu.pipeline_mode<synchronous>, transform_indices = @transform_6, window_bounds = array<i64: 1, 128>}, {transform_indices = @transform_7, window_bounds = array<i64: 8, 128>}]} {
    %c0_i32 = arith.constant 0 : i32
    %0 = arith.cmpi eq, %arg1, %c0_i32 : i32
    %1 = arith.extui %0 : i1 to i32
    %c0_i32_0 = arith.constant 0 : i32
    %2 = arith.cmpi ne, %1, %c0_i32_0 : i32
    scf.if %2 {
      %cst_45 = arith.constant 0.000000e+00 : f32
      %139 = vector.broadcast %cst_45 : f32 to vector<8x128xf32>
      %c0_46 = arith.constant 0 : index
      %c0_47 = arith.constant 0 : index
      %140 = vector.load %arg10[%c0_46, %c0_47] : memref<8x128xf32, #tpu.memory_space<vmem>>, vector<8x128xf32>
      tpu.vector_store %arg10[%c0_46, %c0_47], %139 {strides = array<i32>} : memref<8x128xf32, #tpu.memory_space<vmem>>, vector<8x128xf32>,
    } else {
    }
    %c0 = arith.constant 0 : index
    %c0_1 = arith.constant 0 : index
    %c0_2 = arith.constant 0 : index
    %3 = vector.load %arg2[%c0, %c0_1, %c0_2] : memref<1x32x128xbf16, #tpu.memory_space<vmem>>, vector<1x32x128xbf16>
    %4 = vector.shape_cast %3 : vector<1x32x128xbf16> to vector<32x128xbf16>
    %c0_3 = arith.constant 0 : index
    %c0_4 = arith.constant 0 : index
    %5 = vector.load %arg3[%c0_3, %c0_4] : memref<128x384xbf16, #tpu.memory_space<vmem>>, vector<128x384xbf16>
    %cst = arith.constant dense<0.000000e+00> : vector<32x384xf32>
    %6 = tpu.matmul %4, %5, %cst {dimension_numbers = #tpu.dot_dimension_numbers<[1], [0], [0], [1], [0, 0, 1, 1], [], []>} : vector<32x128xbf16>, vector<128x384xbf16>, vector<32x384xf32> -> vector<32x384xf32>
    %c0_5 = arith.constant 0 : index
    %c0_6 = arith.constant 0 : index
    %7 = vector.load %arg4[%c0_5, %c0_6] : memref<1x384xf32, #tpu.memory_space<vmem>>, vector<1x384xf32>
    %8 = vector.broadcast %7 : vector<1x384xf32> to vector<32x384xf32>
    %9 = arith.addf %6, %8 : vector<32x384xf32>
    %c0_7 = arith.constant 0 : index
    %c0_8 = arith.constant 0 : index
    %10 = vector.load %arg11[%c0_7, %c0_8] : memref<32x384xf32, #tpu.memory_space<vmem>>, vector<32x384xf32>
    tpu.vector_store %arg11[%c0_7, %c0_8], %9 {strides = array<i32>} : memref<32x384xf32, #tpu.memory_space<vmem>>, vector<32x384xf32>,
    %c0_9 = arith.constant 0 : index
    %c0_10 = arith.constant 0 : index
    %11 = vector.load %arg6[%c0_9, %c0_10] : memref<1x128xf32, #tpu.memory_space<vmem>>, vector<1x128xf32>
    %12 = vector.shape_cast %11 : vector<1x128xf32> to vector<1x128xf32>
    %13 = vector.broadcast %12 : vector<1x128xf32> to vector<8x128xf32>
    %c0_11 = arith.constant 0 : index
    %c0_12 = arith.constant 0 : index
    %14 = vector.load %arg10[%c0_11, %c0_12] : memref<8x128xf32, #tpu.memory_space<vmem>>, vector<8x128xf32>
    %c0_13 = arith.constant 0 : index
    %c0_14 = arith.constant 0 : index
    %15 = vector.load %arg11[%c0_13, %c0_14] : memref<32x384xf32, #tpu.memory_space<vmem>>, vector<8x384xf32>
    %c0_15 = arith.constant 0 : index
    %c0_16 = arith.constant 0 : index
    %16 = vector.load %arg5[%c0_15, %c0_16] : memref<128x384xf32, #tpu.memory_space<vmem>>, vector<128x384xf32>
    %cst_17 = arith.constant dense<0.000000e+00> : vector<8x384xf32>
    %17 = tpu.matmul %14, %16, %cst_17 {dimension_numbers = #tpu.dot_dimension_numbers<[1], [0], [0], [1], [0, 0, 1, 1], [], []>} : vector<8x128xf32>, vector<128x384xf32>, vector<8x384xf32> -> vector<8x384xf32>
    %18 = vector.extract_strided_slice %15 {offsets = [0, 0], sizes = [8, 128], strides = [1, 1]} : vector<8x384xf32> to vector<8x128xf32>
    %19 = vector.extract_strided_slice %17 {offsets = [0, 0], sizes = [8, 128], strides = [1, 1]} : vector<8x384xf32> to vector<8x128xf32>
    %20 = arith.addf %18, %19 : vector<8x128xf32>
    %21 = arith.negf %20 : vector<8x128xf32>
    %22 = math.exp %21 : vector<8x128xf32>
    %cst_18 = arith.constant 1.000000e+00 : f32
    %23 = vector.broadcast %cst_18 : f32 to vector<8x128xf32>
    %24 = arith.addf %23, %22 : vector<8x128xf32>
    %25 = arith.divf %23, %24 : vector<8x128xf32>
    %26 = vector.extract_strided_slice %15 {offsets = [0, 128], sizes = [8, 128], strides = [1, 1]} : vector<8x384xf32> to vector<8x128xf32>
    %27 = vector.extract_strided_slice %17 {offsets = [0, 128], sizes = [8, 128], strides = [1, 1]} : vector<8x384xf32> to vector<8x128xf32>
    %28 = arith.addf %26, %27 : vector<8x128xf32>
    %29 = arith.negf %28 : vector<8x128xf32>
    %30 = math.exp %29 : vector<8x128xf32>
    %cst_19 = arith.constant 1.000000e+00 : f32
    %31 = vector.broadcast %cst_19 : f32 to vector<8x128xf32>
    %32 = arith.addf %31, %30 : vector<8x128xf32>
    %33 = arith.divf %31, %32 : vector<8x128xf32>
    %34 = vector.extract_strided_slice %15 {offsets = [0, 256], sizes = [8, 128], strides = [1, 1]} : vector<8x384xf32> to vector<8x128xf32>
    %35 = vector.extract_strided_slice %17 {offsets = [0, 256], sizes = [8, 128], strides = [1, 1]} : vector<8x384xf32> to vector<8x128xf32>
    %36 = arith.addf %35, %13 : vector<8x128xf32>
    %37 = arith.mulf %25, %36 : vector<8x128xf32>
    %38 = arith.addf %34, %37 : vector<8x128xf32>
    %39 = math.tanh %38 : vector<8x128xf32>
    %cst_20 = arith.constant 1.000000e+00 : f32
    %40 = vector.broadcast %cst_20 : f32 to vector<8x128xf32>
    %41 = arith.subf %40, %33 : vector<8x128xf32>
    %42 = arith.mulf %41, %39 : vector<8x128xf32>
    %43 = arith.mulf %33, %14 : vector<8x128xf32>
    %44 = arith.addf %42, %43 : vector<8x128xf32>
    %c8 = arith.constant 8 : index
    %c0_21 = arith.constant 0 : index
    %45 = vector.load %arg11[%c8, %c0_21] : memref<32x384xf32, #tpu.memory_space<vmem>>, vector<8x384xf32>
    %c0_22 = arith.constant 0 : index
    %c0_23 = arith.constant 0 : index
    %46 = vector.load %arg5[%c0_22, %c0_23] : memref<128x384xf32, #tpu.memory_space<vmem>>, vector<128x384xf32>
    %cst_24 = arith.constant dense<0.000000e+00> : vector<8x384xf32>
    %47 = tpu.matmul %44, %46, %cst_24 {dimension_numbers = #tpu.dot_dimension_numbers<[1], [0], [0], [1], [0, 0, 1, 1], [], []>} : vector<8x128xf32>, vector<128x384xf32>, vector<8x384xf32> -> vector<8x384xf32>
    %48 = vector.extract_strided_slice %45 {offsets = [0, 0], sizes = [8, 128], strides = [1, 1]} : vector<8x384xf32> to vector<8x128xf32>
    %49 = vector.extract_strided_slice %47 {offsets = [0, 0], sizes = [8, 128], strides = [1, 1]} : vector<8x384xf32> to vector<8x128xf32>
    %50 = arith.addf %48, %49 : vector<8x128xf32>
    %51 = arith.negf %50 : vector<8x128xf32>
    %52 = math.exp %51 : vector<8x128xf32>
    %cst_25 = arith.constant 1.000000e+00 : f32
    %53 = vector.broadcast %cst_25 : f32 to vector<8x128xf32>
    %54 = arith.addf %53, %52 : vector<8x128xf32>
    %55 = arith.divf %53, %54 : vector<8x128xf32>
    %56 = vector.extract_strided_slice %45 {offsets = [0, 128], sizes = [8, 128], strides = [1, 1]} : vector<8x384xf32> to vector<8x128xf32>
    %57 = vector.extract_strided_slice %47 {offsets = [0, 128], sizes = [8, 128], strides = [1, 1]} : vector<8x384xf32> to vector<8x128xf32>
    %58 = arith.addf %56, %57 : vector<8x128xf32>
    %59 = arith.negf %58 : vector<8x128xf32>
    %60 = math.exp %59 : vector<8x128xf32>
    %cst_26 = arith.constant 1.000000e+00 : f32
    %61 = vector.broadcast %cst_26 : f32 to vector<8x128xf32>
    %62 = arith.addf %61, %60 : vector<8x128xf32>
    %63 = arith.divf %61, %62 : vector<8x128xf32>
    %64 = vector.extract_strided_slice %45 {offsets = [0, 256], sizes = [8, 128], strides = [1, 1]} : vector<8x384xf32> to vector<8x128xf32>
    %65 = vector.extract_strided_slice %47 {offsets = [0, 256], sizes = [8, 128], strides = [1, 1]} : vector<8x384xf32> to vector<8x128xf32>
    %66 = arith.addf %65, %13 : vector<8x128xf32>
    %67 = arith.mulf %55, %66 : vector<8x128xf32>
    %68 = arith.addf %64, %67 : vector<8x128xf32>
    %69 = math.tanh %68 : vector<8x128xf32>
    %cst_27 = arith.constant 1.000000e+00 : f32
    %70 = vector.broadcast %cst_27 : f32 to vector<8x128xf32>
    %71 = arith.subf %70, %63 : vector<8x128xf32>
    %72 = arith.mulf %71, %69 : vector<8x128xf32>
    %73 = arith.mulf %63, %44 : vector<8x128xf32>
    %74 = arith.addf %72, %73 : vector<8x128xf32>
    %c16 = arith.constant 16 : index
    %c0_28 = arith.constant 0 : index
    %75 = vector.load %arg11[%c16, %c0_28] : memref<32x384xf32, #tpu.memory_space<vmem>>, vector<8x384xf32>
    %c0_29 = arith.constant 0 : index
    %c0_30 = arith.constant 0 : index
    %76 = vector.load %arg5[%c0_29, %c0_30] : memref<128x384xf32, #tpu.memory_space<vmem>>, vector<128x384xf32>
    %cst_31 = arith.constant dense<0.000000e+00> : vector<8x384xf32>
    %77 = tpu.matmul %74, %76, %cst_31 {dimension_numbers = #tpu.dot_dimension_numbers<[1], [0], [0], [1], [0, 0, 1, 1], [], []>} : vector<8x128xf32>, vector<128x384xf32>, vector<8x384xf32> -> vector<8x384xf32>
    %78 = vector.extract_strided_slice %75 {offsets = [0, 0], sizes = [8, 128], strides = [1, 1]} : vector<8x384xf32> to vector<8x128xf32>
    %79 = vector.extract_strided_slice %77 {offsets = [0, 0], sizes = [8, 128], strides = [1, 1]} : vector<8x384xf32> to vector<8x128xf32>
    %80 = arith.addf %78, %79 : vector<8x128xf32>
    %81 = arith.negf %80 : vector<8x128xf32>
    %82 = math.exp %81 : vector<8x128xf32>
    %cst_32 = arith.constant 1.000000e+00 : f32
    %83 = vector.broadcast %cst_32 : f32 to vector<8x128xf32>
    %84 = arith.addf %83, %82 : vector<8x128xf32>
    %85 = arith.divf %83, %84 : vector<8x128xf32>
    %86 = vector.extract_strided_slice %75 {offsets = [0, 128], sizes = [8, 128], strides = [1, 1]} : vector<8x384xf32> to vector<8x128xf32>
    %87 = vector.extract_strided_slice %77 {offsets = [0, 128], sizes = [8, 128], strides = [1, 1]} : vector<8x384xf32> to vector<8x128xf32>
    %88 = arith.addf %86, %87 : vector<8x128xf32>
    %89 = arith.negf %88 : vector<8x128xf32>
    %90 = math.exp %89 : vector<8x128xf32>
    %cst_33 = arith.constant 1.000000e+00 : f32
    %91 = vector.broadcast %cst_33 : f32 to vector<8x128xf32>
    %92 = arith.addf %91, %90 : vector<8x128xf32>
    %93 = arith.divf %91, %92 : vector<8x128xf32>
    %94 = vector.extract_strided_slice %75 {offsets = [0, 256], sizes = [8, 128], strides = [1, 1]} : vector<8x384xf32> to vector<8x128xf32>
    %95 = vector.extract_strided_slice %77 {offsets = [0, 256], sizes = [8, 128], strides = [1, 1]} : vector<8x384xf32> to vector<8x128xf32>
    %96 = arith.addf %95, %13 : vector<8x128xf32>
    %97 = arith.mulf %85, %96 : vector<8x128xf32>
    %98 = arith.addf %94, %97 : vector<8x128xf32>
    %99 = math.tanh %98 : vector<8x128xf32>
    %cst_34 = arith.constant 1.000000e+00 : f32
    %100 = vector.broadcast %cst_34 : f32 to vector<8x128xf32>
    %101 = arith.subf %100, %93 : vector<8x128xf32>
    %102 = arith.mulf %101, %99 : vector<8x128xf32>
    %103 = arith.mulf %93, %74 : vector<8x128xf32>
    %104 = arith.addf %102, %103 : vector<8x128xf32>
    %c24 = arith.constant 24 : index
    %c0_35 = arith.constant 0 : index
    %105 = vector.load %arg11[%c24, %c0_35] : memref<32x384xf32, #tpu.memory_space<vmem>>, vector<8x384xf32>
    %c0_36 = arith.constant 0 : index
    %c0_37 = arith.constant 0 : index
    %106 = vector.load %arg5[%c0_36, %c0_37] : memref<128x384xf32, #tpu.memory_space<vmem>>, vector<128x384xf32>
    %cst_38 = arith.constant dense<0.000000e+00> : vector<8x384xf32>
    %107 = tpu.matmul %104, %106, %cst_38 {dimension_numbers = #tpu.dot_dimension_numbers<[1], [0], [0], [1], [0, 0, 1, 1], [], []>} : vector<8x128xf32>, vector<128x384xf32>, vector<8x384xf32> -> vector<8x384xf32>
    %108 = vector.extract_strided_slice %105 {offsets = [0, 0], sizes = [8, 128], strides = [1, 1]} : vector<8x384xf32> to vector<8x128xf32>
    %109 = vector.extract_strided_slice %107 {offsets = [0, 0], sizes = [8, 128], strides = [1, 1]} : vector<8x384xf32> to vector<8x128xf32>
    %110 = arith.addf %108, %109 : vector<8x128xf32>
    %111 = arith.negf %110 : vector<8x128xf32>
    %112 = math.exp %111 : vector<8x128xf32>
    %cst_39 = arith.constant 1.000000e+00 : f32
    %113 = vector.broadcast %cst_39 : f32 to vector<8x128xf32>
    %114 = arith.addf %113, %112 : vector<8x128xf32>
    %115 = arith.divf %113, %114 : vector<8x128xf32>
    %116 = vector.extract_strided_slice %105 {offsets = [0, 128], sizes = [8, 128], strides = [1, 1]} : vector<8x384xf32> to vector<8x128xf32>
    %117 = vector.extract_strided_slice %107 {offsets = [0, 128], sizes = [8, 128], strides = [1, 1]} : vector<8x384xf32> to vector<8x128xf32>
    %118 = arith.addf %116, %117 : vector<8x128xf32>
    %119 = arith.negf %118 : vector<8x128xf32>
    %120 = math.exp %119 : vector<8x128xf32>
    %cst_40 = arith.constant 1.000000e+00 : f32
    %121 = vector.broadcast %cst_40 : f32 to vector<8x128xf32>
    %122 = arith.addf %121, %120 : vector<8x128xf32>
    %123 = arith.divf %121, %122 : vector<8x128xf32>
    %124 = vector.extract_strided_slice %105 {offsets = [0, 256], sizes = [8, 128], strides = [1, 1]} : vector<8x384xf32> to vector<8x128xf32>
    %125 = vector.extract_strided_slice %107 {offsets = [0, 256], sizes = [8, 128], strides = [1, 1]} : vector<8x384xf32> to vector<8x128xf32>
    %126 = arith.addf %125, %13 : vector<8x128xf32>
    %127 = arith.mulf %115, %126 : vector<8x128xf32>
    %128 = arith.addf %124, %127 : vector<8x128xf32>
    %129 = math.tanh %128 : vector<8x128xf32>
    %cst_41 = arith.constant 1.000000e+00 : f32
    %130 = vector.broadcast %cst_41 : f32 to vector<8x128xf32>
    %131 = arith.subf %130, %123 : vector<8x128xf32>
    %132 = arith.mulf %131, %129 : vector<8x128xf32>
    %133 = arith.mulf %123, %104 : vector<8x128xf32>
    %134 = arith.addf %132, %133 : vector<8x128xf32>
    %c0_42 = arith.constant 0 : index
    %c0_43 = arith.constant 0 : index
    %135 = vector.load %arg10[%c0_42, %c0_43] : memref<8x128xf32, #tpu.memory_space<vmem>>, vector<8x128xf32>
    tpu.vector_store %arg10[%c0_42, %c0_43], %134 {strides = array<i32>} : memref<8x128xf32, #tpu.memory_space<vmem>>, vector<8x128xf32>,
    %c1_i32 = arith.constant 1 : i32
    %136 = arith.cmpi eq, %arg1, %c1_i32 : i32
    %137 = arith.extui %136 : i1 to i32
    %c0_i32_44 = arith.constant 0 : i32
    %138 = arith.cmpi ne, %137, %c0_i32_44 : i32
    scf.if %138 {
      %c0_45 = arith.constant 0 : index
      %c0_46 = arith.constant 0 : index
      %139 = vector.load %arg7[%c0_45, %c0_46] : memref<128x128xf32, #tpu.memory_space<vmem>>, vector<128x128xf32>
      %cst_47 = arith.constant dense<0.000000e+00> : vector<8x128xf32>
      %140 = tpu.matmul %134, %139, %cst_47 {dimension_numbers = #tpu.dot_dimension_numbers<[1], [0], [0], [1], [0, 0, 1, 1], [], []>} : vector<8x128xf32>, vector<128x128xf32>, vector<8x128xf32> -> vector<8x128xf32>
      %c0_48 = arith.constant 0 : index
      %c0_49 = arith.constant 0 : index
      %141 = vector.load %arg8[%c0_48, %c0_49] : memref<1x128xf32, #tpu.memory_space<vmem>>, vector<1x128xf32>
      %142 = vector.broadcast %141 : vector<1x128xf32> to vector<8x128xf32>
      %143 = arith.addf %140, %142 : vector<8x128xf32>
      %c0_50 = arith.constant 0 : index
      %c0_51 = arith.constant 0 : index
      %144 = vector.load %arg9[%c0_50, %c0_51] : memref<8x128xf32, #tpu.memory_space<vmem>>, vector<8x128xf32>
      tpu.vector_store %arg9[%c0_50, %c0_51], %143 {strides = array<i32>} : memref<8x128xf32, #tpu.memory_space<vmem>>, vector<8x128xf32>,
    } else {
    }
    return
  }
  func.func @transform_0(%arg0: i32, %arg1: i32) -> (i32, i32, i32) {
    %c0_i32 = arith.constant 0 : i32
    %c0_i32_0 = arith.constant 0 : i32
    return %arg0, %arg1, %c0_i32 : i32, i32, i32
  }
  func.func @transform_1(%arg0: i32, %arg1: i32) -> (i32, i32) {
    %c0_i32 = arith.constant 0 : i32
    %c0_i32_0 = arith.constant 0 : i32
    %c0_i32_1 = arith.constant 0 : i32
    return %c0_i32, %c0_i32_0 : i32, i32
  }
  func.func @transform_2(%arg0: i32, %arg1: i32) -> (i32, i32) {
    %c0_i32 = arith.constant 0 : i32
    %c0_i32_0 = arith.constant 0 : i32
    %c0_i32_1 = arith.constant 0 : i32
    return %c0_i32, %c0_i32_0 : i32, i32
  }
  func.func @transform_3(%arg0: i32, %arg1: i32) -> (i32, i32) {
    %c0_i32 = arith.constant 0 : i32
    %c0_i32_0 = arith.constant 0 : i32
    %c0_i32_1 = arith.constant 0 : i32
    return %c0_i32, %c0_i32_0 : i32, i32
  }
  func.func @transform_4(%arg0: i32, %arg1: i32) -> (i32, i32) {
    %c0_i32 = arith.constant 0 : i32
    %c0_i32_0 = arith.constant 0 : i32
    %c0_i32_1 = arith.constant 0 : i32
    return %c0_i32, %c0_i32_0 : i32, i32
  }
  func.func @transform_5(%arg0: i32, %arg1: i32) -> (i32, i32) {
    %c0_i32 = arith.constant 0 : i32
    %c0_i32_0 = arith.constant 0 : i32
    %c0_i32_1 = arith.constant 0 : i32
    return %c0_i32, %c0_i32_0 : i32, i32
  }
  func.func @transform_6(%arg0: i32, %arg1: i32) -> (i32, i32) {
    %c0_i32 = arith.constant 0 : i32
    %c0_i32_0 = arith.constant 0 : i32
    %c0_i32_1 = arith.constant 0 : i32
    return %c0_i32, %c0_i32_0 : i32, i32
  }
  func.func @transform_7(%arg0: i32, %arg1: i32) -> (i32, i32) {
    %c0_i32 = arith.constant 0 : i32
    %c0_i32_0 = arith.constant 0 : i32
    return %arg0, %c0_i32 : i32, i32
  }
}

</mosaic_0001>

<llo_original>
// kernel: tpu_custom_call.1
$region0: #{tpu_custom_call.1}
  #allocation0 [shape = 'u32[]', space=smem, size = 0x4, offset = 0x4, fixed_abs, tag = 'smem constant byte address 0x4 - core index']
  #allocation1 [shape = 'u32[144,128]{1,0:T(1,128)}', space=vmem, size = 0x12000, scoped, tag = 'internal scratch']
  #allocation2 [shape = 'f32[8,128]{1,0:T(8,128)}', space=vmem, size = 0x1000, scoped, tag = 'scratch operand']
  #allocation3 [shape = 'f32[32,384]{1,0:T(8,128)}', space=vmem, size = 0xc000, scoped, tag = 'scratch operand']
  %s0 = inlined_call_operand.hbm [shape: bf16[1,64,128], index: 0, kind: input, shape index: {}]
  %s1 = inlined_call_operand.hbm [shape: bf16[128,384], index: 1, kind: input, shape index: {}]
  %s2 = inlined_call_operand.vmem [shape: f32[1,384], index: 2, kind: input, shape index: {}]
  %s3 = inlined_call_operand.hbm [shape: f32[128,384], index: 3, kind: input, shape index: {}]
  %s4 = inlined_call_operand.vmem [shape: f32[1,128], index: 4, kind: input, shape index: {}]
  %s5 = inlined_call_operand.hbm [shape: f32[128,128], index: 5, kind: input, shape index: {}]
  %s6 = inlined_call_operand.vmem [shape: f32[1,128], index: 6, kind: input, shape index: {}]
  %s7 = inlined_call_operand.hbm [shape: f32[8,128], index: 7, kind: output, shape index: {}]
  %s8 = sld [smem:[#allocation0]]
  $region85: #{tpu_custom_call.1} parent=0
    _
  %s10 = ssub.s32 1, %s8
  %s11 = scalar_select 0, %s10, %s8
  $region1: #{tpu_custom_call.1} parent=0
    #allocation4 [shape = 'u8[16384]{0}', space=vmem, size = 0x4000, scoped, tag = 'input window, operand 0']
    #allocation5 [shape = 's32[2]{0}', space=sflag, size = 0x8, scoped, tag = 'scoped memory for tpu_custom_call.1']
    #allocation6 [shape = 's32[2]{0}', space=sflag, size = 0x8, scoped, tag = 'scoped memory for tpu_custom_call.1']
    #allocation7 [shape = 'u8[98304]{0}', space=vmem, size = 0x18000, scoped, tag = 'input window, operand 1, single buffered']
    #allocation8 [shape = 's32[1]{0}', space=sflag, size = 0x4, scoped, tag = 'scoped memory for tpu_custom_call.1']
    #allocation9 [shape = 'u8[196608]{0}', space=vmem, size = 0x30000, scoped, tag = 'input window, operand 3, single buffered']
    #allocation10 [shape = 'u8[65536]{0}', space=vmem, size = 0x10000, scoped, tag = 'input window, operand 5, single buffered']
    #allocation11 [shape = 's32[1]{0}', space=sflag, size = 0x4, scoped, tag = 'scoped memory for tpu_custom_call.1']
    #allocation12 [shape = 'u8[4096]{0}', space=vmem, size = 0x1000, scoped, tag = 'output window, operand 0, single buffered']
    %12 = vsyncpa [#allocation5], 0
    %s13 = scalar_lea.sflag [#allocation5], 1
    %14 = vsyncpa %s13, 0
    %15 = vsyncpa [#allocation8], 0
    %16 = vsyncpa [#allocation11], 0
    %17 = vsyncpa [#allocation6], 0
    loop: start=0, step=1, limit=4
    $region2: #{tpu_custom_call.1} parent=1 // loop_pre_header
      _
    $region3: #{tpu_custom_call.1} parent=1 // loop_header
      %s19 = sphi 0, %s23
      %p20 = scmp.ge.s32.totalorder %s19, 4
      %s26 = sphi 0, %s38
      %s27 = sphi 0, %s34
      %s28 = sphi 0, %s26
      %s29 = sphi 0, %s27
      %s30 = sphi 0, %s28
      %s31 = sphi 0, %s29
      %s43 = sphi 0, %s45
      %s46 = sphi 0, %s43
      %s47 = sphi 0, %s46
      %s63 = sphi 0, %s47
      %s67 = sphi 0, %s67
      %s69 = sphi 0, %s67
      %s70 = sphi 0, %s69
      %s84 = sphi 0, %s70
      %s88 = sphi 0, %s88
      %s90 = sphi 0, %s88
      %s91 = sphi 0, %s90
      %s105 = sphi 0, %s91
      %s109 = sphi 0, %s109
      %s111 = sphi 0, %s109
      %s112 = sphi 0, %s111
      %s126 = sphi 0, %s112
      %s130 = sphi 0, %s130
      %s132 = sphi 0, %s130
      %s133 = sphi 0, %s132
      %s147 = sphi 0, %s133
      %s151 = sphi 0, %s151
      %s153 = sphi 0, %s151
      %s154 = sphi 0, %s153
      %s168 = sphi 0, %s154
      %s172 = sphi 0, %s172
      %s174 = sphi 0, %s172
      %s175 = sphi 0, %s174
      %s189 = sphi 0, %s175
      %s195 = sphi 0, %s197
      %s198 = sphi 0, %s195
      %s199 = sphi 0, %s198
      %s215 = sphi 0, %s199
    $region4: #{tpu_custom_call.1} parent=1 // loop_header_branch
      %22 = sbr.rel (%p20) target = $region8
    $region5: #{tpu_custom_call.1} parent=1 // loop_body
      %s24 = ssub.s32 %s19, 1
      %s25 = ssub.s32 %s19, 2
      %s32 = sadd.s32 1, %s27
      %p33 = scmp.ge.s32.totalorder %s32, 2
      %s34 = scalar_select %p33, 0, %s32
      %s35 = sadd.s32 1, %s26
      %s36 = scalar_select %p33, %s35, %s26
      %p37 = scmp.ge.s32.totalorder %s36, 1
      %s38 = scalar_select %p37, 0, %s36
      %s39 = ssub.s32 %s26, %s38
      %s40 = ssub.s32 %s27, %s34
      %s41 = sor.u32 %s39, %s40
      %p42 = scmp.eq.s32.totalorder %s41, 0
      %s44 = sadd.s32 %s43, 1
      %s45 = scalar_select %p42, %s43, %s44
      %p48 = pneg %p42
      %p49 = scmp.eq.s32.totalorder %s19, 1
      %p50 = por %p48, %p49
      %p51 = scmp.ne.s32.totalorder %s43, %s46
      %p52 = scmp.eq.s32.totalorder %s19, 0
      %p53 = por %p51, %p52
      %p54 = scmp.ne.s32.totalorder %s43, %s46
      %p55 = scmp.eq.s32.totalorder %s24, 1
      %p56 = por %p54, %p55
      %p57 = scmp.ne.s32.totalorder %s46, %s47
      %p58 = scmp.eq.s32.totalorder %s24, 0
      %p59 = por %p57, %p58
      %p60 = scmp.ne.s32.totalorder %s46, %s47
      %p61 = scmp.eq.s32.totalorder %s25, 1
      %p62 = por %p60, %p61
      %p64 = scmp.ne.s32.totalorder %s47, %s63
      %p65 = scmp.eq.s32.totalorder %s25, 0
      %p66 = por %p64, %p65
      %s68 = sadd.s32 %s67, 1
      %p71 = scmp.eq.s32.totalorder %s19, 1
      %p72 = scmp.ne.s32.totalorder %s67, %s69
      %p73 = scmp.eq.s32.totalorder %s19, 0
      %p74 = por %p72, %p73
      %p75 = scmp.ne.s32.totalorder %s67, %s69
      %p76 = scmp.eq.s32.totalorder %s24, 1
      %p77 = por %p75, %p76
      %p78 = scmp.ne.s32.totalorder %s69, %s70
      %p79 = scmp.eq.s32.totalorder %s24, 0
      %p80 = por %p78, %p79
      %p81 = scmp.ne.s32.totalorder %s69, %s70
      %p82 = scmp.eq.s32.totalorder %s25, 1
      %p83 = por %p81, %p82
      %p85 = scmp.ne.s32.totalorder %s70, %s84
      %p86 = scmp.eq.s32.totalorder %s25, 0
      %p87 = por %p85, %p86
      %s89 = sadd.s32 %s88, 1
      %p92 = scmp.eq.s32.totalorder %s19, 1
      %p93 = scmp.ne.s32.totalorder %s88, %s90
      %p94 = scmp.eq.s32.totalorder %s19, 0
      %p95 = por %p93, %p94
      %p96 = scmp.ne.s32.totalorder %s88, %s90
      %p97 = scmp.eq.s32.totalorder %s24, 1
      %p98 = por %p96, %p97
      %p99 = scmp.ne.s32.totalorder %s90, %s91
      %p100 = scmp.eq.s32.totalorder %s24, 0
      %p101 = por %p99, %p100
      %p102 = scmp.ne.s32.totalorder %s90, %s91
      %p103 = scmp.eq.s32.totalorder %s25, 1
      %p104 = por %p102, %p103
      %p106 = scmp.ne.s32.totalorder %s91, %s105
      %p107 = scmp.eq.s32.totalorder %s25, 0
      %p108 = por %p106, %p107
      %s110 = sadd.s32 %s109, 1
      %p113 = scmp.eq.s32.totalorder %s19, 1
      %p114 = scmp.ne.s32.totalorder %s109, %s111
      %p115 = scmp.eq.s32.totalorder %s19, 0
      %p116 = por %p114, %p115
      %p117 = scmp.ne.s32.totalorder %s109, %s111
      %p118 = scmp.eq.s32.totalorder %s24, 1
      %p119 = por %p117, %p118
      %p120 = scmp.ne.s32.totalorder %s111, %s112
      %p121 = scmp.eq.s32.totalorder %s24, 0
      %p122 = por %p120, %p121
      %p123 = scmp.ne.s32.totalorder %s111, %s112
      %p124 = scmp.eq.s32.totalorder %s25, 1
      %p125 = por %p123, %p124
      %p127 = scmp.ne.s32.totalorder %s112, %s126
      %p128 = scmp.eq.s32.totalorder %s25, 0
      %p129 = por %p127, %p128
      %s131 = sadd.s32 %s130, 1
      %p134 = scmp.eq.s32.totalorder %s19, 1
      %p135 = scmp.ne.s32.totalorder %s130, %s132
      %p136 = scmp.eq.s32.totalorder %s19, 0
      %p137 = por %p135, %p136
      %p138 = scmp.ne.s32.totalorder %s130, %s132
      %p139 = scmp.eq.s32.totalorder %s24, 1
      %p140 = por %p138, %p139
      %p141 = scmp.ne.s32.totalorder %s132, %s133
      %p142 = scmp.eq.s32.totalorder %s24, 0
      %p143 = por %p141, %p142
      %p144 = scmp.ne.s32.totalorder %s132, %s133
      %p145 = scmp.eq.s32.totalorder %s25, 1
      %p146 = por %p144, %p145
      %p148 = scmp.ne.s32.totalorder %s133, %s147
      %p149 = scmp.eq.s32.totalorder %s25, 0
      %p150 = por %p148, %p149
      %s152 = sadd.s32 %s151, 1
      %p155 = scmp.eq.s32.totalorder %s19, 1
      %p156 = scmp.ne.s32.totalorder %s151, %s153
      %p157 = scmp.eq.s32.totalorder %s19, 0
      %p158 = por %p156, %p157
      %p159 = scmp.ne.s32.totalorder %s151, %s153
      %p160 = scmp.eq.s32.totalorder %s24, 1
      %p161 = por %p159, %p160
      %p162 = scmp.ne.s32.totalorder %s153, %s154
      %p163 = scmp.eq.s32.totalorder %s24, 0
      %p164 = por %p162, %p163
      %p165 = scmp.ne.s32.totalorder %s153, %s154
      %p166 = scmp.eq.s32.totalorder %s25, 1
      %p167 = por %p165, %p166
      %p169 = scmp.ne.s32.totalorder %s154, %s168
      %p170 = scmp.eq.s32.totalorder %s25, 0
      %p171 = por %p169, %p170
      %s173 = sadd.s32 %s172, 1
      %p176 = scmp.eq.s32.totalorder %s19, 1
      %p177 = scmp.ne.s32.totalorder %s172, %s174
      %p178 = scmp.eq.s32.totalorder %s19, 0
      %p179 = por %p177, %p178
      %p180 = scmp.ne.s32.totalorder %s172, %s174
      %p181 = scmp.eq.s32.totalorder %s24, 1
      %p182 = por %p180, %p181
      %p183 = scmp.ne.s32.totalorder %s174, %s175
      %p184 = scmp.eq.s32.totalorder %s24, 0
      %p185 = por %p183, %p184
      %p186 = scmp.ne.s32.totalorder %s174, %s175
      %p187 = scmp.eq.s32.totalorder %s25, 1
      %p188 = por %p186, %p187
      %p190 = scmp.ne.s32.totalorder %s175, %s189
      %p191 = scmp.eq.s32.totalorder %s25, 0
      %p192 = por %p190, %p191
      %s193 = ssub.s32 %s26, %s38
      %p194 = scmp.eq.s32.totalorder %s193, 0
      %s196 = sadd.s32 %s195, 1
      %s197 = scalar_select %p194, %s195, %s196
      %p200 = pneg %p194
      %p201 = scmp.eq.s32.totalorder %s19, 1
      %p202 = por %p200, %p201
      %p203 = scmp.ne.s32.totalorder %s195, %s198
      %p204 = scmp.eq.s32.totalorder %s19, 0
      %p205 = por %p203, %p204
      %p206 = scmp.ne.s32.totalorder %s195, %s198
      %p207 = scmp.eq.s32.totalorder %s24, 1
      %p208 = por %p206, %p207
      %p209 = scmp.ne.s32.totalorder %s198, %s199
      %p210 = scmp.eq.s32.totalorder %s24, 0
      %p211 = por %p209, %p210
      %p212 = scmp.ne.s32.totalorder %s198, %s199
      %p213 = scmp.eq.s32.totalorder %s25, 1
      %p214 = por %p212, %p213
      %p216 = scmp.ne.s32.totalorder %s199, %s215
      %p217 = scmp.eq.s32.totalorder %s25, 0
      %p218 = por %p216, %p217
      %p219 = scmp.le.s32.totalorder 1, %s19
      %p220 = scmp.lt.s32.totalorder %s19, 3
      %p221 = pnand %p219, %p220
      %p222 = pneg %p221
      // Predicated region
      $region9: #{tpu_custom_call.1} parent=5 // pred_check
        _
      $region10: #{tpu_custom_call.1} parent=5 // pred_check_branch
        %224 = sbr.rel (%p221) target = $region12
      $region11: #{tpu_custom_call.1} parent=5 // pred_region
        %s225 = ssub.s32 %s19, 1
        // Predicated region
        $region13: #{tpu_custom_call.1} parent=11 // pred_check
          %p226 = pneg %p80
        $region14: #{tpu_custom_call.1} parent=11 // pred_check_branch
          %228 = sbr.rel (%p226) target = $region16
        $region15: #{tpu_custom_call.1} parent=11 // pred_region
          %s230 = ssub.s32 3072, 3072
          %231 = vsyncadd [#allocation8], %s230
          %s232 = sshll.u32 [#allocation7], 4
          %s233 = int_to_ptr.vmem [resolvable:$true] %s232
          %238 = dma.hbm_to_vmem [thread:$0]  %s1, 3072, %s233, [#allocation8], 192, 192, 12
        $region16: #{tpu_custom_call.1} parent=11 // pred_fallthru
          _
        // Predicated region
        $region17: #{tpu_custom_call.1} parent=11 // pred_check
          %p239 = pneg %p101
        $region18: #{tpu_custom_call.1} parent=11 // pred_check_branch
          %241 = sbr.rel (%p239) target = $region20
        $region19: #{tpu_custom_call.1} parent=11 // pred_region
          _
        $region20: #{tpu_custom_call.1} parent=11 // pred_fallthru
          _
        // Predicated region
        $region21: #{tpu_custom_call.1} parent=11 // pred_check
          %p242 = pneg %p122
        $region22: #{tpu_custom_call.1} parent=11 // pred_check_branch
          %244 = sbr.rel (%p242) target = $region24
        $region23: #{tpu_custom_call.1} parent=11 // pred_region
          %s246 = ssub.s32 6144, 6144
          %247 = vsyncadd [#allocation8], %s246
          %s248 = sshll.u32 [#allocation9], 4
          %s249 = int_to_ptr.vmem [resolvable:$true] %s248
          %254 = dma.hbm_to_vmem [thread:$0]  %s3, 6144, %s249, [#allocation8], 384, 384, 24
        $region24: #{tpu_custom_call.1} parent=11 // pred_fallthru
          _
        // Predicated region
        $region25: #{tpu_custom_call.1} parent=11 // pred_check
          %p255 = pneg %p143
        $region26: #{tpu_custom_call.1} parent=11 // pred_check_branch
          %257 = sbr.rel (%p255) target = $region28
        $region27: #{tpu_custom_call.1} parent=11 // pred_region
          _
        $region28: #{tpu_custom_call.1} parent=11 // pred_fallthru
          _
        // Predicated region
        $region29: #{tpu_custom_call.1} parent=11 // pred_check
          %p258 = pneg %p164
        $region30: #{tpu_custom_call.1} parent=11 // pred_check_branch
          %260 = sbr.rel (%p258) target = $region32
        $region31: #{tpu_custom_call.1} parent=11 // pred_region
          %s262 = ssub.s32 2048, 2048
          %263 = vsyncadd [#allocation11], %s262
          %s264 = sshll.u32 [#allocation10], 4
          %s265 = int_to_ptr.vmem [resolvable:$true] %s264
          %270 = dma.hbm_to_vmem [thread:$0]  %s5, 2048, %s265, [#allocation11], 128, 128, 8
        $region32: #{tpu_custom_call.1} parent=11 // pred_fallthru
          _
        // Predicated region
        $region33: #{tpu_custom_call.1} parent=11 // pred_check
          %p271 = pneg %p185
        $region34: #{tpu_custom_call.1} parent=11 // pred_check_branch
          %273 = sbr.rel (%p271) target = $region36
        $region35: #{tpu_custom_call.1} parent=11 // pred_region
          _
        $region36: #{tpu_custom_call.1} parent=11 // pred_fallthru
          _
      $region12: #{tpu_custom_call.1} parent=5 // pred_fallthru
        _
      %p274 = scmp.lt.s32.totalorder %s19, 2
      // Predicated region
      $region37: #{tpu_custom_call.1} parent=5 // pred_check
        %p275 = pneg %p274
      $region38: #{tpu_custom_call.1} parent=5 // pred_check_branch
        %277 = sbr.rel (%p275) target = $region40
      $region39: #{tpu_custom_call.1} parent=5 // pred_region
        // Predicated region
        $region41: #{tpu_custom_call.1} parent=39 // pred_check
          %p278 = pneg %p53
        $region42: #{tpu_custom_call.1} parent=39 // pred_check_branch
          %280 = sbr.rel (%p278) target = $region44
        $region43: #{tpu_custom_call.1} parent=39 // pred_region
          %s281 = sand.u32 %s43, 1
          %s282 = scalar_lea.sflag [#allocation5], %s281
          %s283 = sand.u32 %s43, 1
          %s284 = smul.addr %s283, 16
          %s285 = scalar_lea.vmem [#allocation4], %s284
          %s286 = smul.u32 4, %s27
          %s288 = ssub.s32 256, 256
          %289 = vsyncadd %s282, %s288
          %s290 = smul.addr %s26, 8
          %s291 = sadd.s32 %s286, %s290
          %s292 = smul.addr %s291, 64
          %s293 = scalar_lea.hbm %s0, %s292
          %s294 = sshll.u32 %s285, 4
          %s295 = int_to_ptr.vmem [resolvable:$true] %s294
          %300 = dma.hbm_to_vmem [thread:$0]  %s293, 256, %s295, %s282, 64, 64, 4
        $region44: #{tpu_custom_call.1} parent=39 // pred_fallthru
          _
      $region40: #{tpu_custom_call.1} parent=5 // pred_fallthru
        _
      %p301 = scmp.le.s32.totalorder 1, %s19
      %p302 = scmp.lt.s32.totalorder %s19, 3
      %p303 = pnand %p301, %p302
      %p304 = pneg %p303
      // Predicated region
      $region45: #{tpu_custom_call.1} parent=5 // pred_check
        _
      $region46: #{tpu_custom_call.1} parent=5 // pred_check_branch
        %306 = sbr.rel (%p303) target = $region48
      $region47: #{tpu_custom_call.1} parent=5 // pred_region
        %s307 = ssub.s32 %s19, 1
        %s308 = sand.u32 %s46, 1
        %s309 = scalar_lea.sflag [#allocation5], %s308
        %s310 = sand.u32 %s46, 1
        %s311 = smul.addr %s310, 16
        %s312 = scalar_lea.vmem [#allocation4], %s311
        // Predicated region
        $region49: #{tpu_custom_call.1} parent=47 // pred_check
          %p313 = pneg %p59
        $region50: #{tpu_custom_call.1} parent=47 // pred_check_branch
          %315 = sbr.rel (%p313) target = $region52
        $region51: #{tpu_custom_call.1} parent=47 // pred_region
          %316 = dma.done %s309, 256
        $region52: #{tpu_custom_call.1} parent=47 // pred_fallthru
          _
        // Predicated region
        $region53: #{tpu_custom_call.1} parent=47 // pred_check
          %p317 = pneg %p80
        $region54: #{tpu_custom_call.1} parent=47 // pred_check_branch
          %319 = sbr.rel (%p317) target = $region56
        $region55: #{tpu_custom_call.1} parent=47 // pred_region
          %320 = dma.done [#allocation8], 3072
        $region56: #{tpu_custom_call.1} parent=47 // pred_fallthru
          _
        // Predicated region
        $region57: #{tpu_custom_call.1} parent=47 // pred_check
          %p321 = pneg %p122
        $region58: #{tpu_custom_call.1} parent=47 // pred_check_branch
          %323 = sbr.rel (%p321) target = $region60
        $region59: #{tpu_custom_call.1} parent=47 // pred_region
          %324 = dma.done [#allocation8], 6144
        $region60: #{tpu_custom_call.1} parent=47 // pred_fallthru
          _
        // Predicated region
        $region61: #{tpu_custom_call.1} parent=47 // pred_check
          %p325 = pneg %p164
        $region62: #{tpu_custom_call.1} parent=47 // pred_check_branch
          %327 = sbr.rel (%p325) target = $region64
        $region63: #{tpu_custom_call.1} parent=47 // pred_region
          %328 = dma.done [#allocation11], 2048
        $region64: #{tpu_custom_call.1} parent=47 // pred_fallthru
          _
        %s329 = sand.u32 %s46, 1
        %s330 = scalar_lea.sflag [#allocation5], %s329
        %s331 = sand.u32 %s46, 1
        %s332 = smul.addr %s331, 16
        %s333 = scalar_lea.vmem [#allocation4], %s332
        %p334 = pneg %p59
        %p335 = pneg %p56
        %p336 = pneg %p80
        %p337 = pneg %p77
        %p338 = pneg %p101
        %p339 = pneg %p98
        %p340 = pneg %p122
        %p341 = pneg %p119
        %p342 = pneg %p143
        %p343 = pneg %p140
        %p344 = pneg %p164
        %p345 = pneg %p161
        %p346 = pneg %p185
        %p347 = pneg %p182
        %p348 = pneg %p211
        %p349 = pneg %p208
        %s350 = smul.u32 4, %s29
        %p352 = scmp.eq.s32.totalorder %s29, 0
        // Predicated region
        $region65: #{tpu_custom_call.1} parent=47 // pred_check
          %p353 = pneg %p352
        $region66: #{tpu_custom_call.1} parent=47 // pred_check_branch
          %355 = sbr.rel (%p353) target = $region68
        $region67: #{tpu_custom_call.1} parent=47 // pred_region
          %356 = vst [vmem:[#allocation2] sm:$0xff] 0.0
        $region68: #{tpu_custom_call.1} parent=47 // pred_fallthru
          _
        %v357 = vld [vmem:[%s312] sm:$0xf]
        %v358 = vld [vmem:[%s312 + $0x4] sm:$0xf]
        %v359 = vld [vmem:[%s312 + $0x8] sm:$0xf]
        %v360 = vld [vmem:[%s312 + $0xc] sm:$0xf]
        %v361 = vld [vmem:[#allocation7] sm:$0xff]
        %v362 = vld [vmem:[#allocation7 + $0x8] sm:$0xf]
        %v363 = vld [vmem:[#allocation7 + $0xc] sm:$0xff]
        %v364 = vld [vmem:[#allocation7 + $0x14] sm:$0xf]
        %v365 = vld [vmem:[#allocation7 + $0x18] sm:$0xff]
        %v366 = vld [vmem:[#allocation7 + $0x20] sm:$0xf]
        %v367 = vld [vmem:[#allocation7 + $0x24] sm:$0xff]
        %v368 = vld [vmem:[#allocation7 + $0x2c] sm:$0xf]
        %v369 = vld [vmem:[#allocation7 + $0x30] sm:$0xff]
        %v370 = vld [vmem:[#allocation7 + $0x38] sm:$0xf]
        %v371 = vld [vmem:[#allocation7 + $0x3c] sm:$0xff]
        %v372 = vld [vmem:[#allocation7 + $0x44] sm:$0xf]
        %v373 = vld [vmem:[#allocation7 + $0x48] sm:$0xff]
        %v374 = vld [vmem:[#allocation7 + $0x50] sm:$0xf]
        %v375 = vld [vmem:[#allocation7 + $0x54] sm:$0xff]
        %v376 = vld [vmem:[#allocation7 + $0x5c] sm:$0xf]
        %v377 = vld [vmem:[#allocation7 + $0x60] sm:$0xff]
        %v378 = vld [vmem:[#allocation7 + $0x68] sm:$0xf]
        %v379 = vld [vmem:[#allocation7 + $0x6c] sm:$0xff]
        %v380 = vld [vmem:[#allocation7 + $0x74] sm:$0xf]
        %v381 = vld [vmem:[#allocation7 + $0x78] sm:$0xff]
        %v382 = vld [vmem:[#allocation7 + $0x80] sm:$0xf]
        %v383 = vld [vmem:[#allocation7 + $0x84] sm:$0xff]
        %v384 = vld [vmem:[#allocation7 + $0x8c] sm:$0xf]
        %v385 = vld [vmem:[#allocation7 + $0x90] sm:$0xff]
        %v386 = vld [vmem:[#allocation7 + $0x98] sm:$0xf]
        %v387 = vld [vmem:[#allocation7 + $0x9c] sm:$0xff]
        %v388 = vld [vmem:[#allocation7 + $0xa4] sm:$0xf]
        %v389 = vld [vmem:[#allocation7 + $0xa8] sm:$0xff]
        %v390 = vld [vmem:[#allocation7 + $0xb0] sm:$0xf]
        %v391 = vld [vmem:[#allocation7 + $0xb4] sm:$0xff]
        %v392 = vld [vmem:[#allocation7 + $0xbc] sm:$0xf]
        %v393 = vld [vmem:[%s2] sm:$0x7]
        %v395 = vlaneseq
        %v396 = vshrl.u32 %v395, 7
        %v397 = vsub.s32 0, %v396
        %v398 = vrot.slane %v393, %v397
        %v399 = vlaneseq
        %v400 = vshrl.u32 %v399, 7
        %v401 = vsub.s32 1, %v400
        %v402 = vrot.slane %v393, %v401
        %v403 = vlaneseq
        %v404 = vshrl.u32 %v403, 7
        %v405 = vsub.s32 2, %v404
        %v406 = vrot.slane %v393, %v405
        %v414 = vunpack.c.l.b16 %v357
        %v415 = vunpack.c.l.b16 %v358
        %v416 = vunpack.c.l.b16 %v359
        %v417 = vunpack.c.l.b16 %v360
        %v418 = vpack.c.b16 %v415, %v414
        %v419 = vpack.c.b16 %v417, %v416
        %v454 = vunpack.c.l.b16 %v361
        %v455 = vunpack.c.h.b16 %v361
        %v456 = vunpack.c.l.b16 %v362
        %v457 = vunpack.c.l.b16 %v363
        %v458 = vunpack.c.h.b16 %v363
        %v459 = vunpack.c.l.b16 %v364
        %v460 = vunpack.c.l.b16 %v365
        %v461 = vunpack.c.h.b16 %v365
        %v462 = vunpack.c.l.b16 %v366
        %v463 = vunpack.c.l.b16 %v367
        %v464 = vunpack.c.h.b16 %v367
        %v465 = vunpack.c.l.b16 %v368
        %v466 = vunpack.c.l.b16 %v369
        %v467 = vunpack.c.h.b16 %v369
        %v468 = vunpack.c.l.b16 %v370
        %v469 = vunpack.c.l.b16 %v371
        %v470 = vunpack.c.h.b16 %v371
        %v471 = vunpack.c.l.b16 %v372
        %v472 = vunpack.c.l.b16 %v373
        %v473 = vunpack.c.h.b16 %v373
        %v474 = vunpack.c.l.b16 %v374
        %v475 = vunpack.c.l.b16 %v375
        %v476 = vunpack.c.h.b16 %v375
        %v477 = vunpack.c.l.b16 %v376
        %v478 = vunpack.c.l.b16 %v377
        %v479 = vunpack.c.h.b16 %v377
        %v480 = vunpack.c.l.b16 %v378
        %v481 = vunpack.c.l.b16 %v379
        %v482 = vunpack.c.h.b16 %v379
        %v483 = vunpack.c.l.b16 %v380
        %v484 = vunpack.c.l.b16 %v381
        %v485 = vunpack.c.h.b16 %v381
        %v486 = vunpack.c.l.b16 %v382
        %v487 = vunpack.c.l.b16 %v383
        %v488 = vunpack.c.h.b16 %v383
        %v489 = vunpack.c.l.b16 %v384
        %v490 = vunpack.c.l.b16 %v385
        %v491 = vunpack.c.h.b16 %v385
        %v492 = vunpack.c.l.b16 %v386
        %v493 = vunpack.c.l.b16 %v387
        %v494 = vunpack.c.h.b16 %v387
        %v495 = vunpack.c.l.b16 %v388
        %v496 = vunpack.c.l.b16 %v389
        %v497 = vunpack.c.h.b16 %v389
        %v498 = vunpack.c.l.b16 %v390
        %v499 = vunpack.c.l.b16 %v391
        %v500 = vunpack.c.h.b16 %v391
        %v501 = vunpack.c.l.b16 %v392
        %v502 = vpack.c.b16 %v457, %v454
        %v503 = vpack.c.b16 %v458, %v455
        %v504 = vpack.c.b16 %v459, %v456
        %v505 = vpack.c.b16 %v463, %v460
        %v506 = vpack.c.b16 %v464, %v461
        %v507 = vpack.c.b16 %v465, %v462
        %v508 = vpack.c.b16 %v469, %v466
        %v509 = vpack.c.b16 %v470, %v467
        %v510 = vpack.c.b16 %v471, %v468
        %v511 = vpack.c.b16 %v475, %v472
        %v512 = vpack.c.b16 %v476, %v473
        %v513 = vpack.c.b16 %v477, %v474
        %v514 = vpack.c.b16 %v481, %v478
        %v515 = vpack.c.b16 %v482, %v479
        %v516 = vpack.c.b16 %v483, %v480
        %v517 = vpack.c.b16 %v487, %v484
        %v518 = vpack.c.b16 %v488, %v485
        %v519 = vpack.c.b16 %v489, %v486
        %v520 = vpack.c.b16 %v493, %v490
        %v521 = vpack.c.b16 %v494, %v491
        %v522 = vpack.c.b16 %v495, %v492
        %v523 = vpack.c.b16 %v499, %v496
        %v524 = vpack.c.b16 %v500, %v497
        %v525 = vpack.c.b16 %v501, %v498
        %550 = vmatprep.subr.bf16.mxu0 %v503
        %551 = vmatpush1.bf16.msra.mxu0 %v502
        %552 = vmatprep.subr.bf16.mxu0 %v506
        %553 = vmatpush1.bf16.msra.mxu0 %v505
        %554 = vmatprep.subr.bf16.mxu0 %v509
        %555 = vmatpush1.bf16.msra.mxu0 %v508
        %556 = vmatprep.subr.bf16.mxu0 %v512
        %557 = vmatpush1.bf16.msra.mxu0 %v511
        %558 = vmatprep.subr.bf16.mxu0 %v515
        %559 = vmatpush1.bf16.msra.mxu0 %v514
        %560 = vmatprep.subr.bf16.mxu0 %v518
        %561 = vmatpush1.bf16.msra.mxu0 %v517
        %562 = vmatprep.subr.bf16.mxu0 %v521
        %563 = vmatpush1.bf16.msra.mxu0 %v520
        %564 = vmatprep.subr.bf16.mxu0 %v524
        %565 = vmatpush1.bf16.msra.mxu0 %v523
        %566 = vmatprep.subr.bf16.mxu0 0
        %567 = vmatpush1.bf16.msra.mxu0 0
        %568 = vmatprep.subr.bf16.mxu0 0
        %569 = vmatpush1.bf16.msra.mxu0 0
        %570 = vmatprep.subr.bf16.mxu0 0
        %571 = vmatpush1.bf16.msra.mxu0 0
        %572 = vmatprep.subr.bf16.mxu0 0
        %573 = vmatpush1.bf16.msra.mxu0 0
        %574 = vmatprep.subr.bf16.mxu0 0
        %575 = vmatpush1.bf16.msra.mxu0 0
        %576 = vmatprep.subr.bf16.mxu0 0
        %577 = vmatpush1.bf16.msra.mxu0 0
        %578 = vmatprep.subr.bf16.mxu0 0
        %579 = vmatpush1.bf16.msra.mxu0 0
        %580 = vmatprep.subr.bf16.mxu0 0
        %581 = vmatpush1.bf16.msra.mxu0 0
        %582 = vmatprep.mubr.bf16.mxu0 0
        %583 = vmatmul.mubr.bf16.gmra.mrb[0].mxu0 %v418
        %v584 = vpop.f32.mrb[0].mxu0
        %v585 = vadd.f32 %v398, %v584
        %v586 = vpop.f32.mrb[0].mxu0
        %v587 = vadd.f32 %v402, %v586
        %v588 = vpop.f32.mrb[0].mxu0
        %v589 = vadd.f32 %v398, %v588
        %v590 = vpop.f32.mrb[0].mxu0
        %v591 = vadd.f32 %v402, %v590
        %592 = vmatprep.mubr.bf16.mxu0 0
        %593 = vmatmul.mubr.bf16.gmra.mrb[0].mxu0 %v419
        %v594 = vpop.f32.mrb[0].mxu0
        %v595 = vadd.f32 %v398, %v594
        %v596 = vpop.f32.mrb[0].mxu0
        %v597 = vadd.f32 %v402, %v596
        %v598 = vpop.f32.mrb[0].mxu0
        %v599 = vadd.f32 %v398, %v598
        %v600 = vpop.f32.mrb[0].mxu0
        %v601 = vadd.f32 %v402, %v600
        %602 = vdwg.mxu0
        %603 = vmatprep.subr.bf16.mxu0 0
        %604 = vmatpush1.bf16.msra.mxu0 %v504
        %605 = vmatprep.subr.bf16.mxu0 0
        %606 = vmatpush1.bf16.msra.mxu0 %v507
        %607 = vmatprep.subr.bf16.mxu0 0
        %608 = vmatpush1.bf16.msra.mxu0 %v510
        %609 = vmatprep.subr.bf16.mxu0 0
        %610 = vmatpush1.bf16.msra.mxu0 %v513
        %611 = vmatprep.subr.bf16.mxu0 0
        %612 = vmatpush1.bf16.msra.mxu0 %v516
        %613 = vmatprep.subr.bf16.mxu0 0
        %614 = vmatpush1.bf16.msra.mxu0 %v519
        %615 = vmatprep.subr.bf16.mxu0 0
        %616 = vmatpush1.bf16.msra.mxu0 %v522
        %617 = vmatprep.subr.bf16.mxu0 0
        %618 = vmatpush1.bf16.msra.mxu0 %v525
        %619 = vmatprep.subr.bf16.mxu0 0
        %620 = vmatpush1.bf16.msra.mxu0 0
        %621 = vmatprep.subr.bf16.mxu0 0
        %622 = vmatpush1.bf16.msra.mxu0 0
        %623 = vmatprep.subr.bf16.mxu0 0
        %624 = vmatpush1.bf16.msra.mxu0 0
        %625 = vmatprep.subr.bf16.mxu0 0
        %626 = vmatpush1.bf16.msra.mxu0 0
        %627 = vmatprep.subr.bf16.mxu0 0
        %628 = vmatpush1.bf16.msra.mxu0 0
        %629 = vmatprep.subr.bf16.mxu0 0
        %630 = vmatpush1.bf16.msra.mxu0 0
        %631 = vmatprep.subr.bf16.mxu0 0
        %632 = vmatpush1.bf16.msra.mxu0 0
        %633 = vmatprep.subr.bf16.mxu0 0
        %634 = vmatpush1.bf16.msra.mxu0 0
        %635 = vmatprep.mubr.bf16.mxu0 0
        %636 = vmatmul.mubr.bf16.gmra.mrb[0].mxu0 %v418
        %v637 = vpop.f32.mrb[0].mxu0
        %v638 = vadd.f32 %v406, %v637
        %v639 = vpop.f32.mrb[0].mxu0
        %v640 = vpop.f32.mrb[0].mxu0
        %v641 = vadd.f32 %v406, %v640
        %v642 = vpop.f32.mrb[0].mxu0
        %643 = vmatprep.mubr.bf16.mxu0 0
        %644 = vmatmul.mubr.bf16.gmra.mrb[0].mxu0 %v419
        %v645 = vpop.f32.mrb[0].mxu0
        %v646 = vadd.f32 %v406, %v645
        %v647 = vpop.f32.mrb[0].mxu0
        %v648 = vpop.f32.mrb[0].mxu0
        %v649 = vadd.f32 %v406, %v648
        %v650 = vpop.f32.mrb[0].mxu0
        %651 = vdwg.mxu0
        %652 = vst [vmem:[#allocation3] sm:$0xff] %v585
        %653 = vst [vmem:[#allocation3 + $0x8] sm:$0xff] %v587
        %654 = vst [vmem:[#allocation3 + $0x10] sm:$0xff] %v638
        %655 = vst [vmem:[#allocation3 + $0x18] sm:$0xff] %v589
        %656 = vst [vmem:[#allocation3 + $0x20] sm:$0xff] %v591
        %657 = vst [vmem:[#allocation3 + $0x28] sm:$0xff] %v641
        %658 = vst [vmem:[#allocation3 + $0x30] sm:$0xff] %v595
        %659 = vst [vmem:[#allocation3 + $0x38] sm:$0xff] %v597
        %660 = vst [vmem:[#allocation3 + $0x40] sm:$0xff] %v646
        %661 = vst [vmem:[#allocation3 + $0x48] sm:$0xff] %v599
        %662 = vst [vmem:[#allocation3 + $0x50] sm:$0xff] %v601
        %663 = vst [vmem:[#allocation3 + $0x58] sm:$0xff] %v649
        %v664 = vld [vmem:[%s4] sm:$0x1]
        %v666 = vlaneseq
        %v667 = vshrl.u32 %v666, 7
        %v668 = vsub.s32 0, %v667
        %v669 = vrot.slane %v664, %v668
        %v671 = vld [vmem:[#allocation2] sm:$0xff]
        %v672 = vld [vmem:[#allocation3] sm:$0xff]
        %v673 = vld [vmem:[#allocation3 + $0x8] sm:$0xff]
        %v674 = vld [vmem:[#allocation3 + $0x10] sm:$0xff]
        %v675 = vld [vmem:[#allocation9] sm:$0xff]
        %v676 = vld [vmem:[#allocation9 + $0x8] sm:$0xff]
        %v677 = vld [vmem:[#allocation9 + $0x10] sm:$0xff]
        %v678 = vld [vmem:[#allocation9 + $0x18] sm:$0xff]
        %v679 = vld [vmem:[#allocation9 + $0x20] sm:$0xff]
        %v680 = vld [vmem:[#allocation9 + $0x28] sm:$0xff]
        %v681 = vld [vmem:[#allocation9 + $0x30] sm:$0xff]
        %v682 = vld [vmem:[#allocation9 + $0x38] sm:$0xff]
        %v683 = vld [vmem:[#allocation9 + $0x40] sm:$0xff]
        %v684 = vld [vmem:[#allocation9 + $0x48] sm:$0xff]
        %v685 = vld [vmem:[#allocation9 + $0x50] sm:$0xff]
        %v686 = vld [vmem:[#allocation9 + $0x58] sm:$0xff]
        %v687 = vld [vmem:[#allocation9 + $0x60] sm:$0xff]
        %v688 = vld [vmem:[#allocation9 + $0x68] sm:$0xff]
        %v689 = vld [vmem:[#allocation9 + $0x70] sm:$0xff]
        %v690 = vld [vmem:[#allocation9 + $0x78] sm:$0xff]
        %v691 = vld [vmem:[#allocation9 + $0x80] sm:$0xff]
        %v692 = vld [vmem:[#allocation9 + $0x88] sm:$0xff]
        %v693 = vld [vmem:[#allocation9 + $0x90] sm:$0xff]
        %v694 = vld [vmem:[#allocation9 + $0x98] sm:$0xff]
        %v695 = vld [vmem:[#allocation9 + $0xa0] sm:$0xff]
        %v696 = vld [vmem:[#allocation9 + $0xa8] sm:$0xff]
        %v697 = vld [vmem:[#allocation9 + $0xb0] sm:$0xff]
        %v698 = vld [vmem:[#allocation9 + $0xb8] sm:$0xff]
        %v699 = vld [vmem:[#allocation9 + $0xc0] sm:$0xff]
        %v700 = vld [vmem:[#allocation9 + $0xc8] sm:$0xff]
        %v701 = vld [vmem:[#allocation9 + $0xd0] sm:$0xff]
        %v702 = vld [vmem:[#allocation9 + $0xd8] sm:$0xff]
        %v703 = vld [vmem:[#allocation9 + $0xe0] sm:$0xff]
        %v704 = vld [vmem:[#allocation9 + $0xe8] sm:$0xff]
        %v705 = vld [vmem:[#allocation9 + $0xf0] sm:$0xff]
        %v706 = vld [vmem:[#allocation9 + $0xf8] sm:$0xff]
        %v707 = vld [vmem:[#allocation9 + $0x100] sm:$0xff]
        %v708 = vld [vmem:[#allocation9 + $0x108] sm:$0xff]
        %v709 = vld [vmem:[#allocation9 + $0x110] sm:$0xff]
        %v710 = vld [vmem:[#allocation9 + $0x118] sm:$0xff]
        %v711 = vld [vmem:[#allocation9 + $0x120] sm:$0xff]
        %v712 = vld [vmem:[#allocation9 + $0x128] sm:$0xff]
        %v713 = vld [vmem:[#allocation9 + $0x130] sm:$0xff]
        %v714 = vld [vmem:[#allocation9 + $0x138] sm:$0xff]
        %v715 = vld [vmem:[#allocation9 + $0x140] sm:$0xff]
        %v716 = vld [vmem:[#allocation9 + $0x148] sm:$0xff]
        %v717 = vld [vmem:[#allocation9 + $0x150] sm:$0xff]
        %v718 = vld [vmem:[#allocation9 + $0x158] sm:$0xff]
        %v719 = vld [vmem:[#allocation9 + $0x160] sm:$0xff]
        %v720 = vld [vmem:[#allocation9 + $0x168] sm:$0xff]
        %v721 = vld [vmem:[#allocation9 + $0x170] sm:$0xff]
        %v722 = vld [vmem:[#allocation9 + $0x178] sm:$0xff]
        %723 = vmatprep.subr.mxu0 %v676
        %724 = vmatpush1.msra.mxu0 %v675
        %725 = vmatprep.subr.mxu0 %v679
        %726 = vmatpush1.msra.mxu0 %v678
        %727 = vmatprep.subr.mxu0 %v682
        %728 = vmatpush1.msra.mxu0 %v681
        %729 = vmatprep.subr.mxu0 %v685
        %730 = vmatpush1.msra.mxu0 %v684
        %731 = vmatprep.subr.mxu0 %v688
        %732 = vmatpush1.msra.mxu0 %v687
        %733 = vmatprep.subr.mxu0 %v691
        %734 = vmatpush1.msra.mxu0 %v690
        %735 = vmatprep.subr.mxu0 %v694
        %736 = vmatpush1.msra.mxu0 %v693
        %737 = vmatprep.subr.mxu0 %v697
        %738 = vmatpush1.msra.mxu0 %v696
        %739 = vmatprep.subr.mxu0 %v700
        %740 = vmatpush1.msra.mxu0 %v699
        %741 = vmatprep.subr.mxu0 %v703
        %742 = vmatpush1.msra.mxu0 %v702
        %743 = vmatprep.subr.mxu0 %v706
        %744 = vmatpush1.msra.mxu0 %v705
        %745 = vmatprep.subr.mxu0 %v709
        %746 = vmatpush1.msra.mxu0 %v708
        %747 = vmatprep.subr.mxu0 %v712
        %748 = vmatpush1.msra.mxu0 %v711
        %749 = vmatprep.subr.mxu0 %v715
        %750 = vmatpush1.msra.mxu0 %v714
        %751 = vmatprep.subr.mxu0 %v718
        %752 = vmatpush1.msra.mxu0 %v717
        %753 = vmatprep.subr.mxu0 %v721
        %754 = vmatpush1.msra.mxu0 %v720
        %755 = vmatprep.subr.mxu0 0.0
        %756 = vmatpush1.msra.mxu0 0.0
        %757 = vmatprep.subr.mxu0 0.0
        %758 = vmatpush1.msra.mxu0 0.0
        %759 = vmatprep.subr.mxu0 0.0
        %760 = vmatpush1.msra.mxu0 0.0
        %761 = vmatprep.subr.mxu0 0.0
        %762 = vmatpush1.msra.mxu0 0.0
        %763 = vmatprep.subr.mxu0 0.0
        %764 = vmatpush1.msra.mxu0 0.0
        %765 = vmatprep.subr.mxu0 0.0
        %766 = vmatpush1.msra.mxu0 0.0
        %767 = vmatprep.subr.mxu0 0.0
        %768 = vmatpush1.msra.mxu0 0.0
        %769 = vmatprep.subr.mxu0 0.0
        %770 = vmatpush1.msra.mxu0 0.0
        %771 = vmatprep.subr.mxu0 0.0
        %772 = vmatpush1.msra.mxu0 0.0
        %773 = vmatprep.subr.mxu0 0.0
        %774 = vmatpush1.msra.mxu0 0.0
        %775 = vmatprep.subr.mxu0 0.0
        %776 = vmatpush1.msra.mxu0 0.0
        %777 = vmatprep.subr.mxu0 0.0
        %778 = vmatpush1.msra.mxu0 0.0
        %779 = vmatprep.subr.mxu0 0.0
        %780 = vmatpush1.msra.mxu0 0.0
        %781 = vmatprep.subr.mxu0 0.0
        %782 = vmatpush1.msra.mxu0 0.0
        %783 = vmatprep.subr.mxu0 0.0
        %784 = vmatpush1.msra.mxu0 0.0
        %785 = vmatprep.subr.mxu0 0.0
        %786 = vmatpush1.msra.mxu0 0.0
        %787 = vmatprep.mubr.f32.mxu0 0.0
        %788 = vmatmul.mubr.f32.gmra.mrb[0].mxu0 %v671
        %v789 = vpop.f32.mrb[0].mxu0
        %v790 = vadd.f32 0.0, %v789
        %v791 = vpop.f32.mrb[0].mxu0
        %v792 = vadd.f32 0.0, %v791
        %793 = vdwg.mxu0
        %794 = vmatprep.subr.mxu0 0.0
        %795 = vmatpush1.msra.mxu0 %v677
        %796 = vmatprep.subr.mxu0 0.0
        %797 = vmatpush1.msra.mxu0 %v680
        %798 = vmatprep.subr.mxu0 0.0
        %799 = vmatpush1.msra.mxu0 %v683
        %800 = vmatprep.subr.mxu0 0.0
        %801 = vmatpush1.msra.mxu0 %v686
        %802 = vmatprep.subr.mxu0 0.0
        %803 = vmatpush1.msra.mxu0 %v689
        %804 = vmatprep.subr.mxu0 0.0
        %805 = vmatpush1.msra.mxu0 %v692
        %806 = vmatprep.subr.mxu0 0.0
        %807 = vmatpush1.msra.mxu0 %v695
        %808 = vmatprep.subr.mxu0 0.0
        %809 = vmatpush1.msra.mxu0 %v698
        %810 = vmatprep.subr.mxu0 0.0
        %811 = vmatpush1.msra.mxu0 %v701
        %812 = vmatprep.subr.mxu0 0.0
        %813 = vmatpush1.msra.mxu0 %v704
        %814 = vmatprep.subr.mxu0 0.0
        %815 = vmatpush1.msra.mxu0 %v707
        %816 = vmatprep.subr.mxu0 0.0
        %817 = vmatpush1.msra.mxu0 %v710
        %818 = vmatprep.subr.mxu0 0.0
        %819 = vmatpush1.msra.mxu0 %v713
        %820 = vmatprep.subr.mxu0 0.0
        %821 = vmatpush1.msra.mxu0 %v716
        %822 = vmatprep.subr.mxu0 0.0
        %823 = vmatpush1.msra.mxu0 %v719
        %824 = vmatprep.subr.mxu0 0.0
        %825 = vmatpush1.msra.mxu0 %v722
        %826 = vmatprep.subr.mxu0 0.0
        %827 = vmatpush1.msra.mxu0 0.0
        %828 = vmatprep.subr.mxu0 0.0
        %829 = vmatpush1.msra.mxu0 0.0
        %830 = vmatprep.subr.mxu0 0.0
        %831 = vmatpush1.msra.mxu0 0.0
        %832 = vmatprep.subr.mxu0 0.0
        %833 = vmatpush1.msra.mxu0 0.0
        %834 = vmatprep.subr.mxu0 0.0
        %835 = vmatpush1.msra.mxu0 0.0
        %836 = vmatprep.subr.mxu0 0.0
        %837 = vmatpush1.msra.mxu0 0.0
        %838 = vmatprep.subr.mxu0 0.0
        %839 = vmatpush1.msra.mxu0 0.0
        %840 = vmatprep.subr.mxu0 0.0
        %841 = vmatpush1.msra.mxu0 0.0
        %842 = vmatprep.subr.mxu0 0.0
        %843 = vmatpush1.msra.mxu0 0.0
        %844 = vmatprep.subr.mxu0 0.0
        %845 = vmatpush1.msra.mxu0 0.0
        %846 = vmatprep.subr.mxu0 0.0
        %847 = vmatpush1.msra.mxu0 0.0
        %848 = vmatprep.subr.mxu0 0.0
        %849 = vmatpush1.msra.mxu0 0.0
        %850 = vmatprep.subr.mxu0 0.0
        %851 = vmatpush1.msra.mxu0 0.0
        %852 = vmatprep.subr.mxu0 0.0
        %853 = vmatpush1.msra.mxu0 0.0
        %854 = vmatprep.subr.mxu0 0.0
        %855 = vmatpush1.msra.mxu0 0.0
        %856 = vmatprep.subr.mxu0 0.0
        %857 = vmatpush1.msra.mxu0 0.0
        %858 = vmatprep.mubr.f32.mxu0 0.0
        %859 = vmatmul.mubr.f32.gmra.mrb[0].mxu0 %v671
        %v860 = vpop.f32.mrb[0].mxu0
        %v861 = vadd.f32 0.0, %v860
        %v862 = vpop.f32.mrb[0].mxu0
        %863 = vdwg.mxu0
        %v864 = vadd.f32 %v672, %v790
        %v865 = vxor.u32 %v864, 2147483648
        %v866 = vmul.f32 %v865, 1.442695
        %v867 = vpow.pop %v866
        %v868 = vadd.f32 %v867, 1.0
        %v869 = vrcp.pop %v868
        %v870 = vmul.f32 1.0, %v869
        %v871 = vadd.f32 %v673, %v792
        %v872 = vxor.u32 %v871, 2147483648
        %v873 = vmul.f32 %v872, 1.442695
        %v874 = vpow.pop %v873
        %v875 = vadd.f32 %v874, 1.0
        %v876 = vrcp.pop %v875
        %v877 = vmul.f32 1.0, %v876
        %v878 = vadd.f32 %v861, %v669
        %v879 = vmul.f32 %v870, %v878
        %v880 = vadd.f32 %v674, %v879
        %v881 = vtanh.pop %v880
        %v882 = vsub.f32 1.0, %v877
        %v883 = vmul.f32 %v882, %v881
        %v884 = vmul.f32 %v877, %v671
        %v885 = vadd.f32 %v883, %v884
        %v886 = vld [vmem:[#allocation3 + $0x18] sm:$0xff]
        %v887 = vld [vmem:[#allocation3 + $0x20] sm:$0xff]
        %v888 = vld [vmem:[#allocation3 + $0x28] sm:$0xff]
        %889 = vmatprep.subr.mxu0 %v676
        %890 = vmatpush1.msra.mxu0 %v675
        %891 = vmatprep.subr.mxu0 %v679
        %892 = vmatpush1.msra.mxu0 %v678
        %893 = vmatprep.subr.mxu0 %v682
        %894 = vmatpush1.msra.mxu0 %v681
        %895 = vmatprep.subr.mxu0 %v685
        %896 = vmatpush1.msra.mxu0 %v684
        %897 = vmatprep.subr.mxu0 %v688
        %898 = vmatpush1.msra.mxu0 %v687
        %899 = vmatprep.subr.mxu0 %v691
        %900 = vmatpush1.msra.mxu0 %v690
        %901 = vmatprep.subr.mxu0 %v694
        %902 = vmatpush1.msra.mxu0 %v693
        %903 = vmatprep.subr.mxu0 %v697
        %904 = vmatpush1.msra.mxu0 %v696
        %905 = vmatprep.subr.mxu0 %v700
        %906 = vmatpush1.msra.mxu0 %v699
        %907 = vmatprep.subr.mxu0 %v703
        %908 = vmatpush1.msra.mxu0 %v702
        %909 = vmatprep.subr.mxu0 %v706
        %910 = vmatpush1.msra.mxu0 %v705
        %911 = vmatprep.subr.mxu0 %v709
        %912 = vmatpush1.msra.mxu0 %v708
        %913 = vmatprep.subr.mxu0 %v712
        %914 = vmatpush1.msra.mxu0 %v711
        %915 = vmatprep.subr.mxu0 %v715
        %916 = vmatpush1.msra.mxu0 %v714
        %917 = vmatprep.subr.mxu0 %v718
        %918 = vmatpush1.msra.mxu0 %v717
        %919 = vmatprep.subr.mxu0 %v721
        %920 = vmatpush1.msra.mxu0 %v720
        %921 = vmatprep.subr.mxu0 0.0
        %922 = vmatpush1.msra.mxu0 0.0
        %923 = vmatprep.subr.mxu0 0.0
        %924 = vmatpush1.msra.mxu0 0.0
        %925 = vmatprep.subr.mxu0 0.0
        %926 = vmatpush1.msra.mxu0 0.0
        %927 = vmatprep.subr.mxu0 0.0
        %928 = vmatpush1.msra.mxu0 0.0
        %929 = vmatprep.subr.mxu0 0.0
        %930 = vmatpush1.msra.mxu0 0.0
        %931 = vmatprep.subr.mxu0 0.0
        %932 = vmatpush1.msra.mxu0 0.0
        %933 = vmatprep.subr.mxu0 0.0
        %934 = vmatpush1.msra.mxu0 0.0
        %935 = vmatprep.subr.mxu0 0.0
        %936 = vmatpush1.msra.mxu0 0.0
        %937 = vmatprep.subr.mxu0 0.0
        %938 = vmatpush1.msra.mxu0 0.0
        %939 = vmatprep.subr.mxu0 0.0
        %940 = vmatpush1.msra.mxu0 0.0
        %941 = vmatprep.subr.mxu0 0.0
        %942 = vmatpush1.msra.mxu0 0.0
        %943 = vmatprep.subr.mxu0 0.0
        %944 = vmatpush1.msra.mxu0 0.0
        %945 = vmatprep.subr.mxu0 0.0
        %946 = vmatpush1.msra.mxu0 0.0
        %947 = vmatprep.subr.mxu0 0.0
        %948 = vmatpush1.msra.mxu0 0.0
        %949 = vmatprep.subr.mxu0 0.0
        %950 = vmatpush1.msra.mxu0 0.0
        %951 = vmatprep.subr.mxu0 0.0
        %952 = vmatpush1.msra.mxu0 0.0
        %953 = vmatprep.mubr.f32.mxu0 0.0
        %954 = vmatmul.mubr.f32.gmra.mrb[0].mxu0 %v885
        %v955 = vpop.f32.mrb[0].mxu0
        %v956 = vadd.f32 0.0, %v955
        %v957 = vpop.f32.mrb[0].mxu0
        %v958 = vadd.f32 0.0, %v957
        %959 = vdwg.mxu0
        %960 = vmatprep.subr.mxu0 0.0
        %961 = vmatpush1.msra.mxu0 %v677
        %962 = vmatprep.subr.mxu0 0.0
        %963 = vmatpush1.msra.mxu0 %v680
        %964 = vmatprep.subr.mxu0 0.0
        %965 = vmatpush1.msra.mxu0 %v683
        %966 = vmatprep.subr.mxu0 0.0
        %967 = vmatpush1.msra.mxu0 %v686
        %968 = vmatprep.subr.mxu0 0.0
        %969 = vmatpush1.msra.mxu0 %v689
        %970 = vmatprep.subr.mxu0 0.0
        %971 = vmatpush1.msra.mxu0 %v692
        %972 = vmatprep.subr.mxu0 0.0
        %973 = vmatpush1.msra.mxu0 %v695
        %974 = vmatprep.subr.mxu0 0.0
        %975 = vmatpush1.msra.mxu0 %v698
        %976 = vmatprep.subr.mxu0 0.0
        %977 = vmatpush1.msra.mxu0 %v701
        %978 = vmatprep.subr.mxu0 0.0
        %979 = vmatpush1.msra.mxu0 %v704
        %980 = vmatprep.subr.mxu0 0.0
        %981 = vmatpush1.msra.mxu0 %v707
        %982 = vmatprep.subr.mxu0 0.0
        %983 = vmatpush1.msra.mxu0 %v710
        %984 = vmatprep.subr.mxu0 0.0
        %985 = vmatpush1.msra.mxu0 %v713
        %986 = vmatprep.subr.mxu0 0.0
        %987 = vmatpush1.msra.mxu0 %v716
        %988 = vmatprep.subr.mxu0 0.0
        %989 = vmatpush1.msra.mxu0 %v719
        %990 = vmatprep.subr.mxu0 0.0
        %991 = vmatpush1.msra.mxu0 %v722
        %992 = vmatprep.subr.mxu0 0.0
        %993 = vmatpush1.msra.mxu0 0.0
        %994 = vmatprep.subr.mxu0 0.0
        %995 = vmatpush1.msra.mxu0 0.0
        %996 = vmatprep.subr.mxu0 0.0
        %997 = vmatpush1.msra.mxu0 0.0
        %998 = vmatprep.subr.mxu0 0.0
        %999 = vmatpush1.msra.mxu0 0.0
        %1000 = vmatprep.subr.mxu0 0.0
        %1001 = vmatpush1.msra.mxu0 0.0
        %1002 = vmatprep.subr.mxu0 0.0
        %1003 = vmatpush1.msra.mxu0 0.0
        %1004 = vmatprep.subr.mxu0 0.0
        %1005 = vmatpush1.msra.mxu0 0.0
        %1006 = vmatprep.subr.mxu0 0.0
        %1007 = vmatpush1.msra.mxu0 0.0
        %1008 = vmatprep.subr.mxu0 0.0
        %1009 = vmatpush1.msra.mxu0 0.0
        %1010 = vmatprep.subr.mxu0 0.0
        %1011 = vmatpush1.msra.mxu0 0.0
        %1012 = vmatprep.subr.mxu0 0.0
        %1013 = vmatpush1.msra.mxu0 0.0
        %1014 = vmatprep.subr.mxu0 0.0
        %1015 = vmatpush1.msra.mxu0 0.0
        %1016 = vmatprep.subr.mxu0 0.0
        %1017 = vmatpush1.msra.mxu0 0.0
        %1018 = vmatprep.subr.mxu0 0.0
        %1019 = vmatpush1.msra.mxu0 0.0
        %1020 = vmatprep.subr.mxu0 0.0
        %1021 = vmatpush1.msra.mxu0 0.0
        %1022 = vmatprep.subr.mxu0 0.0
        %1023 = vmatpush1.msra.mxu0 0.0
        %1024 = vmatprep.mubr.f32.mxu0 0.0
        %1025 = vmatmul.mubr.f32.gmra.mrb[0].mxu0 %v885
        %v1026 = vpop.f32.mrb[0].mxu0
        %v1027 = vadd.f32 0.0, %v1026
        %v1028 = vpop.f32.mrb[0].mxu0
        %1029 = vdwg.mxu0
        %v1030 = vadd.f32 %v886, %v956
        %v1031 = vxor.u32 %v1030, 2147483648
        %v1032 = vmul.f32 %v1031, 1.442695
        %v1033 = vpow.pop %v1032
        %v1034 = vadd.f32 %v1033, 1.0
        %v1035 = vrcp.pop %v1034
        %v1036 = vmul.f32 1.0, %v1035
        %v1037 = vadd.f32 %v887, %v958
        %v1038 = vxor.u32 %v1037, 2147483648
        %v1039 = vmul.f32 %v1038, 1.442695
        %v1040 = vpow.pop %v1039
        %v1041 = vadd.f32 %v1040, 1.0
        %v1042 = vrcp.pop %v1041
        %v1043 = vmul.f32 1.0, %v1042
        %v1044 = vadd.f32 %v1027, %v669
        %v1045 = vmul.f32 %v1036, %v1044
        %v1046 = vadd.f32 %v888, %v1045
        %v1047 = vtanh.pop %v1046
        %v1048 = vsub.f32 1.0, %v1043
        %v1049 = vmul.f32 %v1048, %v1047
        %v1050 = vmul.f32 %v1043, %v885
        %v1051 = vadd.f32 %v1049, %v1050
        %v1052 = vld [vmem:[#allocation3 + $0x30] sm:$0xff]
        %v1053 = vld [vmem:[#allocation3 + $0x38] sm:$0xff]
        %v1054 = vld [vmem:[#allocation3 + $0x40] sm:$0xff]
        %1055 = vmatprep.subr.mxu0 %v676
        %1056 = vmatpush1.msra.mxu0 %v675
        %1057 = vmatprep.subr.mxu0 %v679
        %1058 = vmatpush1.msra.mxu0 %v678
        %1059 = vmatprep.subr.mxu0 %v682
        %1060 = vmatpush1.msra.mxu0 %v681
        %1061 = vmatprep.subr.mxu0 %v685
        %1062 = vmatpush1.msra.mxu0 %v684
        %1063 = vmatprep.subr.mxu0 %v688
        %1064 = vmatpush1.msra.mxu0 %v687
        %1065 = vmatprep.subr.mxu0 %v691
        %1066 = vmatpush1.msra.mxu0 %v690
        %1067 = vmatprep.subr.mxu0 %v694
        %1068 = vmatpush1.msra.mxu0 %v693
        %1069 = vmatprep.subr.mxu0 %v697
        %1070 = vmatpush1.msra.mxu0 %v696
        %1071 = vmatprep.subr.mxu0 %v700
        %1072 = vmatpush1.msra.mxu0 %v699
        %1073 = vmatprep.subr.mxu0 %v703
        %1074 = vmatpush1.msra.mxu0 %v702
        %1075 = vmatprep.subr.mxu0 %v706
        %1076 = vmatpush1.msra.mxu0 %v705
        %1077 = vmatprep.subr.mxu0 %v709
        %1078 = vmatpush1.msra.mxu0 %v708
        %1079 = vmatprep.subr.mxu0 %v712
        %1080 = vmatpush1.msra.mxu0 %v711
        %1081 = vmatprep.subr.mxu0 %v715
        %1082 = vmatpush1.msra.mxu0 %v714
        %1083 = vmatprep.subr.mxu0 %v718
        %1084 = vmatpush1.msra.mxu0 %v717
        %1085 = vmatprep.subr.mxu0 %v721
        %1086 = vmatpush1.msra.mxu0 %v720
        %1087 = vmatprep.subr.mxu0 0.0
        %1088 = vmatpush1.msra.mxu0 0.0
        %1089 = vmatprep.subr.mxu0 0.0
        %1090 = vmatpush1.msra.mxu0 0.0
        %1091 = vmatprep.subr.mxu0 0.0
        %1092 = vmatpush1.msra.mxu0 0.0
        %1093 = vmatprep.subr.mxu0 0.0
        %1094 = vmatpush1.msra.mxu0 0.0
        %1095 = vmatprep.subr.mxu0 0.0
        %1096 = vmatpush1.msra.mxu0 0.0
        %1097 = vmatprep.subr.mxu0 0.0
        %1098 = vmatpush1.msra.mxu0 0.0
        %1099 = vmatprep.subr.mxu0 0.0
        %1100 = vmatpush1.msra.mxu0 0.0
        %1101 = vmatprep.subr.mxu0 0.0
        %1102 = vmatpush1.msra.mxu0 0.0
        %1103 = vmatprep.subr.mxu0 0.0
        %1104 = vmatpush1.msra.mxu0 0.0
        %1105 = vmatprep.subr.mxu0 0.0
        %1106 = vmatpush1.msra.mxu0 0.0
        %1107 = vmatprep.subr.mxu0 0.0
        %1108 = vmatpush1.msra.mxu0 0.0
        %1109 = vmatprep.subr.mxu0 0.0
        %1110 = vmatpush1.msra.mxu0 0.0
        %1111 = vmatprep.subr.mxu0 0.0
        %1112 = vmatpush1.msra.mxu0 0.0
        %1113 = vmatprep.subr.mxu0 0.0
        %1114 = vmatpush1.msra.mxu0 0.0
        %1115 = vmatprep.subr.mxu0 0.0
        %1116 = vmatpush1.msra.mxu0 0.0
        %1117 = vmatprep.subr.mxu0 0.0
        %1118 = vmatpush1.msra.mxu0 0.0
        %1119 = vmatprep.mubr.f32.mxu0 0.0
        %1120 = vmatmul.mubr.f32.gmra.mrb[0].mxu0 %v1051
        %v1121 = vpop.f32.mrb[0].mxu0
        %v1122 = vadd.f32 0.0, %v1121
        %v1123 = vpop.f32.mrb[0].mxu0
        %v1124 = vadd.f32 0.0, %v1123
        %1125 = vdwg.mxu0
        %1126 = vmatprep.subr.mxu0 0.0
        %1127 = vmatpush1.msra.mxu0 %v677
        %1128 = vmatprep.subr.mxu0 0.0
        %1129 = vmatpush1.msra.mxu0 %v680
        %1130 = vmatprep.subr.mxu0 0.0
        %1131 = vmatpush1.msra.mxu0 %v683
        %1132 = vmatprep.subr.mxu0 0.0
        %1133 = vmatpush1.msra.mxu0 %v686
        %1134 = vmatprep.subr.mxu0 0.0
        %1135 = vmatpush1.msra.mxu0 %v689
        %1136 = vmatprep.subr.mxu0 0.0
        %1137 = vmatpush1.msra.mxu0 %v692
        %1138 = vmatprep.subr.mxu0 0.0
        %1139 = vmatpush1.msra.mxu0 %v695
        %1140 = vmatprep.subr.mxu0 0.0
        %1141 = vmatpush1.msra.mxu0 %v698
        %1142 = vmatprep.subr.mxu0 0.0
        %1143 = vmatpush1.msra.mxu0 %v701
        %1144 = vmatprep.subr.mxu0 0.0
        %1145 = vmatpush1.msra.mxu0 %v704
        %1146 = vmatprep.subr.mxu0 0.0
        %1147 = vmatpush1.msra.mxu0 %v707
        %1148 = vmatprep.subr.mxu0 0.0
        %1149 = vmatpush1.msra.mxu0 %v710
        %1150 = vmatprep.subr.mxu0 0.0
        %1151 = vmatpush1.msra.mxu0 %v713
        %1152 = vmatprep.subr.mxu0 0.0
        %1153 = vmatpush1.msra.mxu0 %v716
        %1154 = vmatprep.subr.mxu0 0.0
        %1155 = vmatpush1.msra.mxu0 %v719
        %1156 = vmatprep.subr.mxu0 0.0
        %1157 = vmatpush1.msra.mxu0 %v722
        %1158 = vmatprep.subr.mxu0 0.0
        %1159 = vmatpush1.msra.mxu0 0.0
        %1160 = vmatprep.subr.mxu0 0.0
        %1161 = vmatpush1.msra.mxu0 0.0
        %1162 = vmatprep.subr.mxu0 0.0
        %1163 = vmatpush1.msra.mxu0 0.0
        %1164 = vmatprep.subr.mxu0 0.0
        %1165 = vmatpush1.msra.mxu0 0.0
        %1166 = vmatprep.subr.mxu0 0.0
        %1167 = vmatpush1.msra.mxu0 0.0
        %1168 = vmatprep.subr.mxu0 0.0
        %1169 = vmatpush1.msra.mxu0 0.0
        %1170 = vmatprep.subr.mxu0 0.0
        %1171 = vmatpush1.msra.mxu0 0.0
        %1172 = vmatprep.subr.mxu0 0.0
        %1173 = vmatpush1.msra.mxu0 0.0
        %1174 = vmatprep.subr.mxu0 0.0
        %1175 = vmatpush1.msra.mxu0 0.0
        %1176 = vmatprep.subr.mxu0 0.0
        %1177 = vmatpush1.msra.mxu0 0.0
        %1178 = vmatprep.subr.mxu0 0.0
        %1179 = vmatpush1.msra.mxu0 0.0
        %1180 = vmatprep.subr.mxu0 0.0
        %1181 = vmatpush1.msra.mxu0 0.0
        %1182 = vmatprep.subr.mxu0 0.0
        %1183 = vmatpush1.msra.mxu0 0.0
        %1184 = vmatprep.subr.mxu0 0.0
        %1185 = vmatpush1.msra.mxu0 0.0
        %1186 = vmatprep.subr.mxu0 0.0
        %1187 = vmatpush1.msra.mxu0 0.0
        %1188 = vmatprep.subr.mxu0 0.0
        %1189 = vmatpush1.msra.mxu0 0.0
        %1190 = vmatprep.mubr.f32.mxu0 0.0
        %1191 = vmatmul.mubr.f32.gmra.mrb[0].mxu0 %v1051
        %v1192 = vpop.f32.mrb[0].mxu0
        %v1193 = vadd.f32 0.0, %v1192
        %v1194 = vpop.f32.mrb[0].mxu0
        %1195 = vdwg.mxu0
        %v1196 = vadd.f32 %v1052, %v1122
        %v1197 = vxor.u32 %v1196, 2147483648
        %v1198 = vmul.f32 %v1197, 1.442695
        %v1199 = vpow.pop %v1198
        %v1200 = vadd.f32 %v1199, 1.0
        %v1201 = vrcp.pop %v1200
        %v1202 = vmul.f32 1.0, %v1201
        %v1203 = vadd.f32 %v1053, %v1124
        %v1204 = vxor.u32 %v1203, 2147483648
        %v1205 = vmul.f32 %v1204, 1.442695
        %v1206 = vpow.pop %v1205
        %v1207 = vadd.f32 %v1206, 1.0
        %v1208 = vrcp.pop %v1207
        %v1209 = vmul.f32 1.0, %v1208
        %v1210 = vadd.f32 %v1193, %v669
        %v1211 = vmul.f32 %v1202, %v1210
        %v1212 = vadd.f32 %v1054, %v1211
        %v1213 = vtanh.pop %v1212
        %v1214 = vsub.f32 1.0, %v1209
        %v1215 = vmul.f32 %v1214, %v1213
        %v1216 = vmul.f32 %v1209, %v1051
        %v1217 = vadd.f32 %v1215, %v1216
        %v1218 = vld [vmem:[#allocation3 + $0x48] sm:$0xff]
        %v1219 = vld [vmem:[#allocation3 + $0x50] sm:$0xff]
        %v1220 = vld [vmem:[#allocation3 + $0x58] sm:$0xff]
        %1221 = vmatprep.subr.mxu0 %v676
        %1222 = vmatpush1.msra.mxu0 %v675
        %1223 = vmatprep.subr.mxu0 %v679
        %1224 = vmatpush1.msra.mxu0 %v678
        %1225 = vmatprep.subr.mxu0 %v682
        %1226 = vmatpush1.msra.mxu0 %v681
        %1227 = vmatprep.subr.mxu0 %v685
        %1228 = vmatpush1.msra.mxu0 %v684
        %1229 = vmatprep.subr.mxu0 %v688
        %1230 = vmatpush1.msra.mxu0 %v687
        %1231 = vmatprep.subr.mxu0 %v691
        %1232 = vmatpush1.msra.mxu0 %v690
        %1233 = vmatprep.subr.mxu0 %v694
        %1234 = vmatpush1.msra.mxu0 %v693
        %1235 = vmatprep.subr.mxu0 %v697
        %1236 = vmatpush1.msra.mxu0 %v696
        %1237 = vmatprep.subr.mxu0 %v700
        %1238 = vmatpush1.msra.mxu0 %v699
        %1239 = vmatprep.subr.mxu0 %v703
        %1240 = vmatpush1.msra.mxu0 %v702
        %1241 = vmatprep.subr.mxu0 %v706
        %1242 = vmatpush1.msra.mxu0 %v705
        %1243 = vmatprep.subr.mxu0 %v709
        %1244 = vmatpush1.msra.mxu0 %v708
        %1245 = vmatprep.subr.mxu0 %v712
        %1246 = vmatpush1.msra.mxu0 %v711
        %1247 = vmatprep.subr.mxu0 %v715
        %1248 = vmatpush1.msra.mxu0 %v714
        %1249 = vmatprep.subr.mxu0 %v718
        %1250 = vmatpush1.msra.mxu0 %v717
        %1251 = vmatprep.subr.mxu0 %v721
        %1252 = vmatpush1.msra.mxu0 %v720
        %1253 = vmatprep.subr.mxu0 0.0
        %1254 = vmatpush1.msra.mxu0 0.0
        %1255 = vmatprep.subr.mxu0 0.0
        %1256 = vmatpush1.msra.mxu0 0.0
        %1257 = vmatprep.subr.mxu0 0.0
        %1258 = vmatpush1.msra.mxu0 0.0
        %1259 = vmatprep.subr.mxu0 0.0
        %1260 = vmatpush1.msra.mxu0 0.0
        %1261 = vmatprep.subr.mxu0 0.0
        %1262 = vmatpush1.msra.mxu0 0.0
        %1263 = vmatprep.subr.mxu0 0.0
        %1264 = vmatpush1.msra.mxu0 0.0
        %1265 = vmatprep.subr.mxu0 0.0
        %1266 = vmatpush1.msra.mxu0 0.0
        %1267 = vmatprep.subr.mxu0 0.0
        %1268 = vmatpush1.msra.mxu0 0.0
        %1269 = vmatprep.subr.mxu0 0.0
        %1270 = vmatpush1.msra.mxu0 0.0
        %1271 = vmatprep.subr.mxu0 0.0
        %1272 = vmatpush1.msra.mxu0 0.0
        %1273 = vmatprep.subr.mxu0 0.0
        %1274 = vmatpush1.msra.mxu0 0.0
        %1275 = vmatprep.subr.mxu0 0.0
        %1276 = vmatpush1.msra.mxu0 0.0
        %1277 = vmatprep.subr.mxu0 0.0
        %1278 = vmatpush1.msra.mxu0 0.0
        %1279 = vmatprep.subr.mxu0 0.0
        %1280 = vmatpush1.msra.mxu0 0.0
        %1281 = vmatprep.subr.mxu0 0.0
        %1282 = vmatpush1.msra.mxu0 0.0
        %1283 = vmatprep.subr.mxu0 0.0
        %1284 = vmatpush1.msra.mxu0 0.0
        %1285 = vmatprep.mubr.f32.mxu0 0.0
        %1286 = vmatmul.mubr.f32.gmra.mrb[0].mxu0 %v1217
        %v1287 = vpop.f32.mrb[0].mxu0
        %v1288 = vadd.f32 0.0, %v1287
        %v1289 = vpop.f32.mrb[0].mxu0
        %v1290 = vadd.f32 0.0, %v1289
        %1291 = vdwg.mxu0
        %1292 = vmatprep.subr.mxu0 0.0
        %1293 = vmatpush1.msra.mxu0 %v677
        %1294 = vmatprep.subr.mxu0 0.0
        %1295 = vmatpush1.msra.mxu0 %v680
        %1296 = vmatprep.subr.mxu0 0.0
        %1297 = vmatpush1.msra.mxu0 %v683
        %1298 = vmatprep.subr.mxu0 0.0
        %1299 = vmatpush1.msra.mxu0 %v686
        %1300 = vmatprep.subr.mxu0 0.0
        %1301 = vmatpush1.msra.mxu0 %v689
        %1302 = vmatprep.subr.mxu0 0.0
        %1303 = vmatpush1.msra.mxu0 %v692
        %1304 = vmatprep.subr.mxu0 0.0
        %1305 = vmatpush1.msra.mxu0 %v695
        %1306 = vmatprep.subr.mxu0 0.0
        %1307 = vmatpush1.msra.mxu0 %v698
        %1308 = vmatprep.subr.mxu0 0.0
        %1309 = vmatpush1.msra.mxu0 %v701
        %1310 = vmatprep.subr.mxu0 0.0
        %1311 = vmatpush1.msra.mxu0 %v704
        %1312 = vmatprep.subr.mxu0 0.0
        %1313 = vmatpush1.msra.mxu0 %v707
        %1314 = vmatprep.subr.mxu0 0.0
        %1315 = vmatpush1.msra.mxu0 %v710
        %1316 = vmatprep.subr.mxu0 0.0
        %1317 = vmatpush1.msra.mxu0 %v713
        %1318 = vmatprep.subr.mxu0 0.0
        %1319 = vmatpush1.msra.mxu0 %v716
        %1320 = vmatprep.subr.mxu0 0.0
        %1321 = vmatpush1.msra.mxu0 %v719
        %1322 = vmatprep.subr.mxu0 0.0
        %1323 = vmatpush1.msra.mxu0 %v722
        %1324 = vmatprep.subr.mxu0 0.0
        %1325 = vmatpush1.msra.mxu0 0.0
        %1326 = vmatprep.subr.mxu0 0.0
        %1327 = vmatpush1.msra.mxu0 0.0
        %1328 = vmatprep.subr.mxu0 0.0
        %1329 = vmatpush1.msra.mxu0 0.0
        %1330 = vmatprep.subr.mxu0 0.0
        %1331 = vmatpush1.msra.mxu0 0.0
        %1332 = vmatprep.subr.mxu0 0.0
        %1333 = vmatpush1.msra.mxu0 0.0
        %1334 = vmatprep.subr.mxu0 0.0
        %1335 = vmatpush1.msra.mxu0 0.0
        %1336 = vmatprep.subr.mxu0 0.0
        %1337 = vmatpush1.msra.mxu0 0.0
        %1338 = vmatprep.subr.mxu0 0.0
        %1339 = vmatpush1.msra.mxu0 0.0
        %1340 = vmatprep.subr.mxu0 0.0
        %1341 = vmatpush1.msra.mxu0 0.0
        %1342 = vmatprep.subr.mxu0 0.0
        %1343 = vmatpush1.msra.mxu0 0.0
        %1344 = vmatprep.subr.mxu0 0.0
        %1345 = vmatpush1.msra.mxu0 0.0
        %1346 = vmatprep.subr.mxu0 0.0
        %1347 = vmatpush1.msra.mxu0 0.0
        %1348 = vmatprep.subr.mxu0 0.0
        %1349 = vmatpush1.msra.mxu0 0.0
        %1350 = vmatprep.subr.mxu0 0.0
        %1351 = vmatpush1.msra.mxu0 0.0
        %1352 = vmatprep.subr.mxu0 0.0
        %1353 = vmatpush1.msra.mxu0 0.0
        %1354 = vmatprep.subr.mxu0 0.0
        %1355 = vmatpush1.msra.mxu0 0.0
        %1356 = vmatprep.mubr.f32.mxu0 0.0
        %1357 = vmatmul.mubr.f32.gmra.mrb[0].mxu0 %v1217
        %v1358 = vpop.f32.mrb[0].mxu0
        %v1359 = vadd.f32 0.0, %v1358
        %v1360 = vpop.f32.mrb[0].mxu0
        %1361 = vdwg.mxu0
        %v1362 = vadd.f32 %v1218, %v1288
        %v1363 = vxor.u32 %v1362, 2147483648
        %v1364 = vmul.f32 %v1363, 1.442695
        %v1365 = vpow.pop %v1364
        %v1366 = vadd.f32 %v1365, 1.0
        %v1367 = vrcp.pop %v1366
        %v1368 = vmul.f32 1.0, %v1367
        %v1369 = vadd.f32 %v1219, %v1290
        %v1370 = vxor.u32 %v1369, 2147483648
        %v1371 = vmul.f32 %v1370, 1.442695
        %v1372 = vpow.pop %v1371
        %v1373 = vadd.f32 %v1372, 1.0
        %v1374 = vrcp.pop %v1373
        %v1375 = vmul.f32 1.0, %v1374
        %v1376 = vadd.f32 %v1359, %v669
        %v1377 = vmul.f32 %v1368, %v1376
        %v1378 = vadd.f32 %v1220, %v1377
        %v1379 = vtanh.pop %v1378
        %v1380 = vsub.f32 1.0, %v1375
        %v1381 = vmul.f32 %v1380, %v1379
        %v1382 = vmul.f32 %v1375, %v1217
        %v1383 = vadd.f32 %v1381, %v1382
        %1384 = vst [vmem:[#allocation2] sm:$0xff] %v1383
        %p1385 = scmp.eq.s32.totalorder %s29, 1
        // Predicated region
        $region69: #{tpu_custom_call.1} parent=47 // pred_check
          %p1386 = pneg %p1385
        $region70: #{tpu_custom_call.1} parent=47 // pred_check_branch
          %1388 = sbr.rel (%p1386) target = $region72
        $region71: #{tpu_custom_call.1} parent=47 // pred_region
          %v1389 = vld [vmem:[#allocation10] sm:$0xff]
          %v1390 = vld [vmem:[#allocation10 + $0x8] sm:$0xff]
          %v1391 = vld [vmem:[#allocation10 + $0x10] sm:$0xff]
          %v1392 = vld [vmem:[#allocation10 + $0x18] sm:$0xff]
          %v1393 = vld [vmem:[#allocation10 + $0x20] sm:$0xff]
          %v1394 = vld [vmem:[#allocation10 + $0x28] sm:$0xff]
          %v1395 = vld [vmem:[#allocation10 + $0x30] sm:$0xff]
          %v1396 = vld [vmem:[#allocation10 + $0x38] sm:$0xff]
          %v1397 = vld [vmem:[#allocation10 + $0x40] sm:$0xff]
          %v1398 = vld [vmem:[#allocation10 + $0x48] sm:$0xff]
          %v1399 = vld [vmem:[#allocation10 + $0x50] sm:$0xff]
          %v1400 = vld [vmem:[#allocation10 + $0x58] sm:$0xff]
          %v1401 = vld [vmem:[#allocation10 + $0x60] sm:$0xff]
          %v1402 = vld [vmem:[#allocation10 + $0x68] sm:$0xff]
          %v1403 = vld [vmem:[#allocation10 + $0x70] sm:$0xff]
          %v1404 = vld [vmem:[#allocation10 + $0x78] sm:$0xff]
          %v1405 = vld [vmem:[%s6] sm:$0x1]
          %v1407 = vlaneseq
          %v1408 = vshrl.u32 %v1407, 7
          %v1409 = vsub.s32 0, %v1408
          %v1410 = vrot.slane %v1405, %v1409
          %1412 = vmatprep.subr.mxu0 0.0
          %1413 = vmatpush1.msra.mxu0 %v1389
          %1414 = vmatprep.subr.mxu0 0.0
          %1415 = vmatpush1.msra.mxu0 %v1390
          %1416 = vmatprep.subr.mxu0 0.0
          %1417 = vmatpush1.msra.mxu0 %v1391
          %1418 = vmatprep.subr.mxu0 0.0
          %1419 = vmatpush1.msra.mxu0 %v1392
          %1420 = vmatprep.subr.mxu0 0.0
          %1421 = vmatpush1.msra.mxu0 %v1393
          %1422 = vmatprep.subr.mxu0 0.0
          %1423 = vmatpush1.msra.mxu0 %v1394
          %1424 = vmatprep.subr.mxu0 0.0
          %1425 = vmatpush1.msra.mxu0 %v1395
          %1426 = vmatprep.subr.mxu0 0.0
          %1427 = vmatpush1.msra.mxu0 %v1396
          %1428 = vmatprep.subr.mxu0 0.0
          %1429 = vmatpush1.msra.mxu0 %v1397
          %1430 = vmatprep.subr.mxu0 0.0
          %1431 = vmatpush1.msra.mxu0 %v1398
          %1432 = vmatprep.subr.mxu0 0.0
          %1433 = vmatpush1.msra.mxu0 %v1399
          %1434 = vmatprep.subr.mxu0 0.0
          %1435 = vmatpush1.msra.mxu0 %v1400
          %1436 = vmatprep.subr.mxu0 0.0
          %1437 = vmatpush1.msra.mxu0 %v1401
          %1438 = vmatprep.subr.mxu0 0.0
          %1439 = vmatpush1.msra.mxu0 %v1402
          %1440 = vmatprep.subr.mxu0 0.0
          %1441 = vmatpush1.msra.mxu0 %v1403
          %1442 = vmatprep.subr.mxu0 0.0
          %1443 = vmatpush1.msra.mxu0 %v1404
          %1444 = vmatprep.subr.mxu0 0.0
          %1445 = vmatpush1.msra.mxu0 0.0
          %1446 = vmatprep.subr.mxu0 0.0
          %1447 = vmatpush1.msra.mxu0 0.0
          %1448 = vmatprep.subr.mxu0 0.0
          %1449 = vmatpush1.msra.mxu0 0.0
          %1450 = vmatprep.subr.mxu0 0.0
          %1451 = vmatpush1.msra.mxu0 0.0
          %1452 = vmatprep.subr.mxu0 0.0
          %1453 = vmatpush1.msra.mxu0 0.0
          %1454 = vmatprep.subr.mxu0 0.0
          %1455 = vmatpush1.msra.mxu0 0.0
          %1456 = vmatprep.subr.mxu0 0.0
          %1457 = vmatpush1.msra.mxu0 0.0
          %1458 = vmatprep.subr.mxu0 0.0
          %1459 = vmatpush1.msra.mxu0 0.0
          %1460 = vmatprep.subr.mxu0 0.0
          %1461 = vmatpush1.msra.mxu0 0.0
          %1462 = vmatprep.subr.mxu0 0.0
          %1463 = vmatpush1.msra.mxu0 0.0
          %1464 = vmatprep.subr.mxu0 0.0
          %1465 = vmatpush1.msra.mxu0 0.0
          %1466 = vmatprep.subr.mxu0 0.0
          %1467 = vmatpush1.msra.mxu0 0.0
          %1468 = vmatprep.subr.mxu0 0.0
          %1469 = vmatpush1.msra.mxu0 0.0
          %1470 = vmatprep.subr.mxu0 0.0
          %1471 = vmatpush1.msra.mxu0 0.0
          %1472 = vmatprep.subr.mxu0 0.0
          %1473 = vmatpush1.msra.mxu0 0.0
          %1474 = vmatprep.subr.mxu0 0.0
          %1475 = vmatpush1.msra.mxu0 0.0
          %1476 = vmatprep.mubr.f32.mxu0 0.0
          %1477 = vmatmul.mubr.f32.gmra.mrb[0].mxu0 %v1383
          %v1478 = vpop.f32.mrb[0].mxu0
          %v1479 = vadd.f32 %v1410, %v1478
          %v1480 = vpop.f32.mrb[0].mxu0
          %1481 = vdwg.mxu0
          %1482 = vst [vmem:[#allocation12] sm:$0xff] %v1479
        $region72: #{tpu_custom_call.1} parent=47 // pred_fallthru
          _
        // Predicated region
        $region73: #{tpu_custom_call.1} parent=47 // pred_check
          %p1483 = pneg %p208
        $region74: #{tpu_custom_call.1} parent=47 // pred_check_branch
          %1485 = sbr.rel (%p1483) target = $region76
        $region75: #{tpu_custom_call.1} parent=47 // pred_region
          %s1487 = ssub.s32 128, 128
          %1488 = vsyncadd [#allocation6], %s1487
          %s1489 = smul.addr %s28, 128
          %s1490 = scalar_lea.hbm %s7, %s1489
          %s1492 = sshll.u32 [#allocation12], 4
          %s1493 = int_to_ptr.vmem [resolvable:$true] %s1492
          %1495 = dma.vmem_to_hbm [thread:$0]  %s1493, 128, %s1490, [#allocation6]
        $region76: #{tpu_custom_call.1} parent=47 // pred_fallthru
          _
        // Predicated region
        $region77: #{tpu_custom_call.1} parent=47 // pred_check
          %p1496 = pneg %p208
        $region78: #{tpu_custom_call.1} parent=47 // pred_check_branch
          %1498 = sbr.rel (%p1496) target = $region80
        $region79: #{tpu_custom_call.1} parent=47 // pred_region
          %1499 = dma.done [#allocation6], 128
        $region80: #{tpu_custom_call.1} parent=47 // pred_fallthru
          _
      $region48: #{tpu_custom_call.1} parent=5 // pred_fallthru
        _
      %p1500 = scmp.le.s32.totalorder 2, %s19
      // Predicated region
      $region81: #{tpu_custom_call.1} parent=5 // pred_check
        %p1501 = pneg %p1500
      $region82: #{tpu_custom_call.1} parent=5 // pred_check_branch
        %1503 = sbr.rel (%p1501) target = $region84
      $region83: #{tpu_custom_call.1} parent=5 // pred_region
        %s1504 = ssub.s32 %s19, 2
      $region84: #{tpu_custom_call.1} parent=5 // pred_fallthru
        _
    $region6: #{tpu_custom_call.1} parent=1 // loop_footer
      %s23 = sadd.s32 1, %s19
    $region7: #{tpu_custom_call.1} parent=1 // loop_footer_branch
      %18 = sbr.rel target = $region3
    $region8: #{tpu_custom_call.1} parent=1 // loop_exit
      _
    %1505 = vsyncpa [#allocation5], 1
    %s1506 = scalar_lea.sflag [#allocation5], 1
    %1507 = vsyncpa %s1506, 1
    %1508 = vsyncpa [#allocation8], 1
    %1509 = vsyncpa [#allocation11], 1
    %1510 = vsyncpa [#allocation6], 1
    %s1511 = scalar_lea.sflag [#allocation6], 1
    %1512 = vsyncpa %s1511, 1

</llo_original>
